<compile_context>
chip_gen: v5e
topology: v5e:2x2
jax: 0.10.0
libtpu: 0.0.40
codegen_flags: <defaults>
</compile_context>

<pallas_src>
import math

import jax
import jax.numpy as jnp
from jax.experimental import pallas as pl
from jax.experimental.pallas import tpu as pltpu

SQRT2 = math.sqrt(2.0)


def _round_up(x, m):
    return ((x + m - 1) // m) * m


# --------------------------------------------------------------------------- kernel
def _make_fused_kernel(n_hidden):
    """Fused MLP kernel for a fixed (static) number of hidden layers.

    All matmuls accumulate in f32 on the MXU; sqrt(2) is pre-folded into the
    weights, and the inter-layer activation lives in vregs (no scratch)."""
    if n_hidden == 0:
        def kernel(x_ref, w0_ref, o_ref):
            x = x_ref[...].astype(w0_ref.dtype)
            h = jnp.dot(x, w0_ref[...], preferred_element_type=jnp.float32)
            o_ref[...] = jnp.maximum(h, 0.0).astype(o_ref.dtype)
        return kernel

    def kernel(x_ref, w0_ref, ws_ref, o_ref):
        cdt = w0_ref.dtype  # MXU compute dtype (bf16)
        h = jnp.dot(x_ref[...].astype(cdt), w0_ref[...],
                    preferred_element_type=jnp.float32)
        h = jnp.maximum(h, 0.0)
        # depth is small and static -> full unroll gives the scheduler visibility.
        for l in range(n_hidden):
            h = jnp.dot(h.astype(cdt), ws_ref[l],
                        preferred_element_type=jnp.float32)
            h = jnp.maximum(h, 0.0)
        o_ref[...] = h.astype(o_ref.dtype)

    return kernel


# --------------------------------------------------------------------------- tiling
def _choose_tile_b(B):
    """Batch-tile heuristic.

    Small/medium B: one full tile (fewest grid steps; best on single-TC
    v5e/v6e -- tall MXU M, no per-step pipeline overhead).  Large B: 256/512
    row tiles so there are >= 2 'parallel' grid steps for the v7x megacore
    while each step keeps M >= 256."""
    B8 = _round_up(max(B, 1), 8)
    if B8 <= 512:
        return B8
    return 256 if B8 <= 2048 else 512


def _x_block_spec(tile_b, K, n_steps):
    index_map = lambda i: (i, 0)
    if n_steps >= 4 and hasattr(pl, "Buffered"):
        # Deeper buffering on the only per-step-varying input hides DMA jitter
        # on long grids; grid-invariant weight specs stay at the default
        # (Pallas fetches them once since their block index never changes).
        try:
            return pl.BlockSpec((tile_b, K), index_map,
                                pipeline_mode=pl.Buffered(3))
        except TypeError:  # BlockSpec without pipeline_mode support
            pass
    return pl.BlockSpec((tile_b, K), index_map)


# --------------------------------------------------------------------------- params
def init_feedforward_params(key, depth, width, in_features=784, dtype=jnp.float32):
    """Synthetic weights matching nn.Linear(out, in) shapes, stored transposed
    as (in, out) for the kernel."""
    assert depth >= 2
    params = []
    k0, key = jax.random.split(key)
    params.append(jax.random.normal(k0, (in_features, width), dtype)
                  * (1.0 / math.sqrt(in_features)))
    for _ in range(depth - 2):
        k, key = jax.random.split(key)
        params.append(jax.random.normal(k, (width, width), dtype)
                      * (1.0 / math.sqrt(width)))
    return params


def prepare_params(params, compute_dtype=jnp.bfloat16):
    """One-time weight prep (do at init, not per call):
      * fold sqrt(2) into every weight (relu(c*y) == c*relu(y) for c > 0),
      * stack the hidden layers into one (n_hidden, W, W) array,
      * cast to the MXU compute dtype (bf16 halves weight HBM/VMEM bytes and
        runs the bf16-native MXU; accumulation stays f32 in the kernel)."""
    w0 = (params[0] * SQRT2).astype(compute_dtype)
    if len(params) > 1:
        w_stack = (jnp.stack(params[1:], axis=0) * SQRT2).astype(compute_dtype)
    else:
        w_stack = None
    return w0, w_stack


# --------------------------------------------------------------------------- forward
def feedforward_forward(x, w0, w_stack=None, *, tile_b=None, out_dtype=None):
    """Fused FeedForward forward.

    x: [B, 784] (any float dtype; cast to w0.dtype inside the kernel so the
       input is read from HBM exactly once, with no wrapper pad/cast pass).
    w0: [784, W]; w_stack: [n_hidden, W, W] or None (from prepare_params)."""
    B, K = x.shape
    assert w0.shape[0] == K, (w0.shape, K)
    W = w0.shape[1]
    n_hidden = 0 if w_stack is None else w_stack.shape[0]
    if out_dtype is None:
        out_dtype = x.dtype

    if tile_b is None:
        tile_b = _choose_tile_b(B)
    B_pad = _round_up(B, tile_b)
    if B_pad != B:
        # Batch-remainder fallback only.  K is NOT padded: (tile_b, 784) with
        # 784 == full array dim is a legal block; the MXU masks K internally.
        x = jnp.pad(x, ((0, B_pad - B), (0, 0)))
    n_steps = B_pad // tile_b

    kernel = _make_fused_kernel(n_hidden)
    in_specs = [
        _x_block_spec(tile_b, K, n_steps),        # one batch tile per grid step
        pl.BlockSpec((K, W), lambda i: (0, 0)),   # grid-invariant, VMEM-resident
    ]
    operands = [x, w0]
    if n_hidden > 0:
        in_specs.append(pl.BlockSpec((n_hidden, W, W), lambda i: (0, 0, 0)))
        operands.append(w_stack)

    out = pl.pallas_call(
        kernel,
        out_shape=jax.ShapeDtypeStruct((B_pad, W), out_dtype),
        grid_spec=pltpu.PrefetchScalarGridSpec(
            num_scalar_prefetch=0,
            grid=(n_steps,),
            in_specs=in_specs,
            out_specs=pl.BlockSpec((tile_b, W), lambda i: (i, 0)),  # 128-lane dense
        ),
        compiler_params=pltpu.CompilerParams(
            dimension_semantics=("parallel",),
        ),
    )(*operands)
    return out if B_pad == B else out[:B]


# --------------------------------------------------------------------------- references
def feedforward_reference_f32(x, params):
    """Pure-JAX f32 reference matching the PyTorch module math exactly."""
    h = x.astype(jnp.float32)
    for w in params:
        h = jnp.maximum(h @ w, 0.0) * SQRT2
    return h


def feedforward_reference_prepared(x, w0, w_stack):
    """Reference using the same prepared (sqrt2-folded, bf16) weights and the
    same bf16-in / f32-accumulate matmul contract as the kernel."""
    cdt = w0.dtype
    h = jnp.maximum(jnp.dot(x.astype(cdt), w0,
                            preferred_element_type=jnp.float32), 0.0)
    if w_stack is not None:
        for l in range(w_stack.shape[0]):
            h = jnp.maximum(jnp.dot(h.astype(cdt), w_stack[l],
                                    preferred_element_type=jnp.float32), 0.0)
    return h


if __name__ == "__main__":
    in_features, width = 784, 128
    key = jax.random.PRNGKey(0)

    # (depth, batch): a small single-tile case, plus a long-grid case that
    # exercises the multi-step / Buffered(3) path and the no-hidden-layer kernel.
    for depth, batch in ((4, 256), (2, 1536)):
        key, kx, kp = jax.random.split(key, 3)
        x = jax.random.normal(kx, (batch, in_features), jnp.float32)
        params = init_feedforward_params(kp, depth, width, in_features)
        w0, w_stack = prepare_params(params)          # once, at init

        out = jax.block_until_ready(feedforward_forward(x, w0, w_stack))
        assert out.shape == (batch, width), out.shape

        # Tight check: kernel vs. a reference with the identical bf16/f32-acc contract.
        ref_bf16 = feedforward_reference_prepared(x, w0, w_stack)
        assert jnp.allclose(out, ref_bf16, atol=2e-3, rtol=2e-3), \
            "mismatch vs bf16-matched reference"

        # Loose sanity check vs. the exact f32 module math (difference = bf16 rounding).
        ref_f32 = feedforward_reference_f32(x, params)
        rel = jnp.abs(out - ref_f32) / jnp.maximum(jnp.abs(ref_f32), 1.0)
        assert float(rel.max()) < 0.15 and float(rel.mean()) < 0.01, \
            (float(rel.max()), float(rel.mean()))

    print("KERNEL_OK")
</pallas_src>

<mosaic_0001>
module attributes {stable_mosaic.version = 11 : i64} {
  func.func @kernel(%arg0: i32, %arg1: memref<256x784xf32, #tpu.memory_space<vmem>>, %arg2: memref<784x128xbf16, #tpu.memory_space<vmem>>, %arg3: memref<2x128x128xbf16, #tpu.memory_space<vmem>>, %arg4: memref<256x128xf32, #tpu.memory_space<vmem>>) attributes {dimension_semantics = [#tpu.dimension_semantics<parallel>], iteration_bounds = array<i64: 1>, scalar_prefetch = 0 : i64, scratch_operands = 0 : i64, tpu.core_type = #tpu.core_type<tc>, window_params = [{transform_indices = @transform_0, window_bounds = array<i64: 256, 784>}, {pipeline_mode = #tpu.pipeline_mode<synchronous>, transform_indices = @transform_1, window_bounds = array<i64: 784, 128>}, {pipeline_mode = #tpu.pipeline_mode<synchronous>, transform_indices = @transform_2, window_bounds = array<i64: 2, 128, 128>}, {transform_indices = @transform_3, window_bounds = array<i64: 256, 128>}]} {
    %c0 = arith.constant 0 : index
    %c0_0 = arith.constant 0 : index
    %0 = vector.load %arg1[%c0, %c0_0] : memref<256x784xf32, #tpu.memory_space<vmem>>, vector<256x784xf32>
    %1 = arith.truncf %0 : vector<256x784xf32> to vector<256x784xbf16>
    %c0_1 = arith.constant 0 : index
    %c0_2 = arith.constant 0 : index
    %2 = vector.load %arg2[%c0_1, %c0_2] : memref<784x128xbf16, #tpu.memory_space<vmem>>, vector<784x128xbf16>
    %cst = arith.constant dense<0.000000e+00> : vector<256x128xf32>
    %3 = tpu.matmul %1, %2, %cst {dimension_numbers = #tpu.dot_dimension_numbers<[1], [0], [0], [1], [0, 0, 1, 1], [], []>} : vector<256x784xbf16>, vector<784x128xbf16>, vector<256x128xf32> -> vector<256x128xf32>
    %cst_3 = arith.constant 0.000000e+00 : f32
    %4 = vector.broadcast %cst_3 : f32 to vector<256x128xf32>
    %5 = arith.maximumf %3, %4 : vector<256x128xf32>
    %6 = arith.truncf %5 : vector<256x128xf32> to vector<256x128xbf16>
    %c0_4 = arith.constant 0 : index
    %c0_5 = arith.constant 0 : index
    %c0_6 = arith.constant 0 : index
    %7 = vector.load %arg3[%c0_4, %c0_5, %c0_6] : memref<2x128x128xbf16, #tpu.memory_space<vmem>>, vector<1x128x128xbf16>
    %8 = vector.shape_cast %7 : vector<1x128x128xbf16> to vector<128x128xbf16>
    %cst_7 = arith.constant dense<0.000000e+00> : vector<256x128xf32>
    %9 = tpu.matmul %6, %8, %cst_7 {dimension_numbers = #tpu.dot_dimension_numbers<[1], [0], [0], [1], [0, 0, 1, 1], [], []>} : vector<256x128xbf16>, vector<128x128xbf16>, vector<256x128xf32> -> vector<256x128xf32>
    %cst_8 = arith.constant 0.000000e+00 : f32
    %10 = vector.broadcast %cst_8 : f32 to vector<256x128xf32>
    %11 = arith.maximumf %9, %10 : vector<256x128xf32>
    %12 = arith.truncf %11 : vector<256x128xf32> to vector<256x128xbf16>
    %c1 = arith.constant 1 : index
    %c0_9 = arith.constant 0 : index
    %c0_10 = arith.constant 0 : index
    %13 = vector.load %arg3[%c1, %c0_9, %c0_10] : memref<2x128x128xbf16, #tpu.memory_space<vmem>>, vector<1x128x128xbf16>
    %14 = vector.shape_cast %13 : vector<1x128x128xbf16> to vector<128x128xbf16>
    %cst_11 = arith.constant dense<0.000000e+00> : vector<256x128xf32>
    %15 = tpu.matmul %12, %14, %cst_11 {dimension_numbers = #tpu.dot_dimension_numbers<[1], [0], [0], [1], [0, 0, 1, 1], [], []>} : vector<256x128xbf16>, vector<128x128xbf16>, vector<256x128xf32> -> vector<256x128xf32>
    %cst_12 = arith.constant 0.000000e+00 : f32
    %16 = vector.broadcast %cst_12 : f32 to vector<256x128xf32>
    %17 = arith.maximumf %15, %16 : vector<256x128xf32>
    %c0_13 = arith.constant 0 : index
    %c0_14 = arith.constant 0 : index
    %18 = vector.load %arg4[%c0_13, %c0_14] : memref<256x128xf32, #tpu.memory_space<vmem>>, vector<256x128xf32>
    tpu.vector_store %arg4[%c0_13, %c0_14], %17 {strides = array<i32>} : memref<256x128xf32, #tpu.memory_space<vmem>>, vector<256x128xf32>,
    return
  }
  func.func @transform_0(%arg0: i32) -> (i32, i32) {
    %c0_i32 = arith.constant 0 : i32
    %c0_i32_0 = arith.constant 0 : i32
    return %arg0, %c0_i32 : i32, i32
  }
  func.func @transform_1(%arg0: i32) -> (i32, i32) {
    %c0_i32 = arith.constant 0 : i32
    %c0_i32_0 = arith.constant 0 : i32
    %c0_i32_1 = arith.constant 0 : i32
    return %c0_i32, %c0_i32_0 : i32, i32
  }
  func.func @transform_2(%arg0: i32) -> (i32, i32, i32) {
    %c0_i32 = arith.constant 0 : i32
    %c0_i32_0 = arith.constant 0 : i32
    %c0_i32_1 = arith.constant 0 : i32
    %c0_i32_2 = arith.constant 0 : i32
    return %c0_i32, %c0_i32_0, %c0_i32_1 : i32, i32, i32
  }
  func.func @transform_3(%arg0: i32) -> (i32, i32) {
    %c0_i32 = arith.constant 0 : i32
    %c0_i32_0 = arith.constant 0 : i32
    return %arg0, %c0_i32 : i32, i32
  }
}

</mosaic_0001>

<llo_original>
// kernel: tpu_custom_call.1
$region0: #{tpu_custom_call.1}
  #allocation0 [shape = 'u32[]', space=smem, size = 0x4, offset = 0x4, fixed_abs, tag = 'smem constant byte address 0x4 - core index']
  #allocation1 [shape = 'u32[72,128]{1,0:T(1,128)}', space=vmem, size = 0x9000, scoped, tag = 'internal scratch']
  %s0 = inlined_call_operand.vmem [shape: f32[256,784], index: 0, kind: input, shape index: {}]
  %s1 = inlined_call_operand.vmem [shape: bf16[784,128], index: 1, kind: input, shape index: {}]
  %s2 = inlined_call_operand.vmem [shape: bf16[2,128,128], index: 2, kind: input, shape index: {}]
  %s3 = inlined_call_operand.hbm [shape: f32[256,128], index: 3, kind: output, shape index: {}]
  %s4 = sld [smem:[#allocation0]]
  $region22: #{tpu_custom_call.1} parent=0
    _
  %s6 = ssub.s32 1, %s4
  %s7 = scalar_select 0, %s6, %s4
  $region1: #{tpu_custom_call.1} parent=0
    #allocation2 [shape = 'u8[131072]{0}', space=vmem, size = 0x20000, scoped, tag = 'output window, operand 0, single buffered']
    #allocation3 [shape = 's32[1]{0}', space=sflag, size = 0x4, scoped, tag = 'scoped memory for tpu_custom_call.1']
    %8 = vsyncpa [#allocation3], 0
    // Predicated region
    $region2: #{tpu_custom_call.1} parent=1 // pred_check
      _
    $region3: #{tpu_custom_call.1} parent=1 // pred_check_branch
      %10 = sbr.rel (0) target = $region5
    $region4: #{tpu_custom_call.1} parent=1 // pred_region
      _
    $region5: #{tpu_custom_call.1} parent=1 // pred_fallthru
      _
    // Predicated region
    $region6: #{tpu_custom_call.1} parent=1 // pred_check
      _
    $region7: #{tpu_custom_call.1} parent=1 // pred_check_branch
      %12 = sbr.rel (0) target = $region9
    $region8: #{tpu_custom_call.1} parent=1 // pred_region
      _
    $region9: #{tpu_custom_call.1} parent=1 // pred_fallthru
      _
    // Predicated region
    $region10: #{tpu_custom_call.1} parent=1 // pred_check
      _
    $region11: #{tpu_custom_call.1} parent=1 // pred_check_branch
      %14 = sbr.rel (0) target = $region13
    $region12: #{tpu_custom_call.1} parent=1 // pred_region
      _
    $region13: #{tpu_custom_call.1} parent=1 // pred_fallthru
      _
    %v16 = vld [vmem:[%s0] sm:$0xff]
    %v17 = vld [vmem:[%s0 + $0x8] sm:$0xff]
    %v18 = vld [vmem:[%s0 + $0x10] sm:$0xff]
    %v19 = vld [vmem:[%s0 + $0x18] sm:$0xff]
    %v20 = vld [vmem:[%s0 + $0x20] sm:$0xff]
    %v21 = vld [vmem:[%s0 + $0x28] sm:$0xff]
    %v22 = vld [vmem:[%s0 + $0x30] sm:$0xff]
    %v23 = vld [vmem:[%s0 + $0x38] sm:$0xff]
    %v24 = vld [vmem:[%s0 + $0x40] sm:$0xff]
    %v25 = vld [vmem:[%s0 + $0x48] sm:$0xff]
    %v26 = vld [vmem:[%s0 + $0x50] sm:$0xff]
    %v27 = vld [vmem:[%s0 + $0x58] sm:$0xff]
    %v28 = vld [vmem:[%s0 + $0x60] sm:$0xff]
    %v29 = vld [vmem:[%s0 + $0x68] sm:$0xff]
    %v30 = vld [vmem:[%s0 + $0x70] sm:$0xff]
    %v31 = vld [vmem:[%s0 + $0x78] sm:$0xff]
    %v32 = vld [vmem:[%s0 + $0x80] sm:$0xff]
    %v33 = vld [vmem:[%s0 + $0x88] sm:$0xff]
    %v34 = vld [vmem:[%s0 + $0x90] sm:$0xff]
    %v35 = vld [vmem:[%s0 + $0x98] sm:$0xff]
    %v36 = vld [vmem:[%s0 + $0xa0] sm:$0xff]
    %v37 = vld [vmem:[%s0 + $0xa8] sm:$0xff]
    %v38 = vld [vmem:[%s0 + $0xb0] sm:$0xff]
    %v39 = vld [vmem:[%s0 + $0xb8] sm:$0xff]
    %v40 = vld [vmem:[%s0 + $0xc0] sm:$0xff]
    %v41 = vld [vmem:[%s0 + $0xc8] sm:$0xff]
    %v42 = vld [vmem:[%s0 + $0xd0] sm:$0xff]
    %v43 = vld [vmem:[%s0 + $0xd8] sm:$0xff]
    %v44 = vld [vmem:[%s0 + $0xe0] sm:$0xff]
    %v45 = vld [vmem:[%s0 + $0xe8] sm:$0xff]
    %v46 = vld [vmem:[%s0 + $0xf0] sm:$0xff]
    %v47 = vld [vmem:[%s0 + $0xf8] sm:$0xff]
    %v48 = vld [vmem:[%s0 + $0x100] sm:$0xff]
    %v49 = vld [vmem:[%s0 + $0x108] sm:$0xff]
    %v50 = vld [vmem:[%s0 + $0x110] sm:$0xff]
    %v51 = vld [vmem:[%s0 + $0x118] sm:$0xff]
    %v52 = vld [vmem:[%s0 + $0x120] sm:$0xff]
    %v53 = vld [vmem:[%s0 + $0x128] sm:$0xff]
    %v54 = vld [vmem:[%s0 + $0x130] sm:$0xff]
    %v55 = vld [vmem:[%s0 + $0x138] sm:$0xff]
    %v56 = vld [vmem:[%s0 + $0x140] sm:$0xff]
    %v57 = vld [vmem:[%s0 + $0x148] sm:$0xff]
    %v58 = vld [vmem:[%s0 + $0x150] sm:$0xff]
    %v59 = vld [vmem:[%s0 + $0x158] sm:$0xff]
    %v60 = vld [vmem:[%s0 + $0x160] sm:$0xff]
    %v61 = vld [vmem:[%s0 + $0x168] sm:$0xff]
    %v62 = vld [vmem:[%s0 + $0x170] sm:$0xff]
    %v63 = vld [vmem:[%s0 + $0x178] sm:$0xff]
    %v64 = vld [vmem:[%s0 + $0x180] sm:$0xff]
    %v65 = vld [vmem:[%s0 + $0x188] sm:$0xff]
    %v66 = vld [vmem:[%s0 + $0x190] sm:$0xff]
    %v67 = vld [vmem:[%s0 + $0x198] sm:$0xff]
    %v68 = vld [vmem:[%s0 + $0x1a0] sm:$0xff]
    %v69 = vld [vmem:[%s0 + $0x1a8] sm:$0xff]
    %v70 = vld [vmem:[%s0 + $0x1b0] sm:$0xff]
    %v71 = vld [vmem:[%s0 + $0x1b8] sm:$0xff]
    %v72 = vld [vmem:[%s0 + $0x1c0] sm:$0xff]
    %v73 = vld [vmem:[%s0 + $0x1c8] sm:$0xff]
    %v74 = vld [vmem:[%s0 + $0x1d0] sm:$0xff]
    %v75 = vld [vmem:[%s0 + $0x1d8] sm:$0xff]
    %v76 = vld [vmem:[%s0 + $0x1e0] sm:$0xff]
    %v77 = vld [vmem:[%s0 + $0x1e8] sm:$0xff]
    %v78 = vld [vmem:[%s0 + $0x1f0] sm:$0xff]
    %v79 = vld [vmem:[%s0 + $0x1f8] sm:$0xff]
    %v80 = vld [vmem:[%s0 + $0x200] sm:$0xff]
    %v81 = vld [vmem:[%s0 + $0x208] sm:$0xff]
    %v82 = vld [vmem:[%s0 + $0x210] sm:$0xff]
    %v83 = vld [vmem:[%s0 + $0x218] sm:$0xff]
    %v84 = vld [vmem:[%s0 + $0x220] sm:$0xff]
    %v85 = vld [vmem:[%s0 + $0x228] sm:$0xff]
    %v86 = vld [vmem:[%s0 + $0x230] sm:$0xff]
    %v87 = vld [vmem:[%s0 + $0x238] sm:$0xff]
    %v88 = vld [vmem:[%s0 + $0x240] sm:$0xff]
    %v89 = vld [vmem:[%s0 + $0x248] sm:$0xff]
    %v90 = vld [vmem:[%s0 + $0x250] sm:$0xff]
    %v91 = vld [vmem:[%s0 + $0x258] sm:$0xff]
    %v92 = vld [vmem:[%s0 + $0x260] sm:$0xff]
    %v93 = vld [vmem:[%s0 + $0x268] sm:$0xff]
    %v94 = vld [vmem:[%s0 + $0x270] sm:$0xff]
    %v95 = vld [vmem:[%s0 + $0x278] sm:$0xff]
    %v96 = vld [vmem:[%s0 + $0x280] sm:$0xff]
    %v97 = vld [vmem:[%s0 + $0x288] sm:$0xff]
    %v98 = vld [vmem:[%s0 + $0x290] sm:$0xff]
    %v99 = vld [vmem:[%s0 + $0x298] sm:$0xff]
    %v100 = vld [vmem:[%s0 + $0x2a0] sm:$0xff]
    %v101 = vld [vmem:[%s0 + $0x2a8] sm:$0xff]
    %v102 = vld [vmem:[%s0 + $0x2b0] sm:$0xff]
    %v103 = vld [vmem:[%s0 + $0x2b8] sm:$0xff]
    %v104 = vld [vmem:[%s0 + $0x2c0] sm:$0xff]
    %v105 = vld [vmem:[%s0 + $0x2c8] sm:$0xff]
    %v106 = vld [vmem:[%s0 + $0x2d0] sm:$0xff]
    %v107 = vld [vmem:[%s0 + $0x2d8] sm:$0xff]
    %v108 = vld [vmem:[%s0 + $0x2e0] sm:$0xff]
    %v109 = vld [vmem:[%s0 + $0x2e8] sm:$0xff]
    %v110 = vld [vmem:[%s0 + $0x2f0] sm:$0xff]
    %v111 = vld [vmem:[%s0 + $0x2f8] sm:$0xff]
    %v112 = vld [vmem:[%s0 + $0x300] sm:$0xff]
    %v113 = vld [vmem:[%s0 + $0x308] sm:$0xff]
    %v114 = vld [vmem:[%s0 + $0x310] sm:$0xff]
    %v115 = vld [vmem:[%s0 + $0x318] sm:$0xff]
    %v116 = vld [vmem:[%s0 + $0x320] sm:$0xff]
    %v117 = vld [vmem:[%s0 + $0x328] sm:$0xff]
    %v118 = vld [vmem:[%s0 + $0x330] sm:$0xff]
    %v119 = vld [vmem:[%s0 + $0x338] sm:$0xff]
    %v120 = vld [vmem:[%s0 + $0x340] sm:$0xff]
    %v121 = vld [vmem:[%s0 + $0x348] sm:$0xff]
    %v122 = vld [vmem:[%s0 + $0x350] sm:$0xff]
    %v123 = vld [vmem:[%s0 + $0x358] sm:$0xff]
    %v124 = vld [vmem:[%s0 + $0x360] sm:$0xff]
    %v125 = vld [vmem:[%s0 + $0x368] sm:$0xff]
    %v126 = vld [vmem:[%s0 + $0x370] sm:$0xff]
    %v127 = vld [vmem:[%s0 + $0x378] sm:$0xff]
    %v128 = vld [vmem:[%s0 + $0x380] sm:$0xff]
    %v129 = vld [vmem:[%s0 + $0x388] sm:$0xff]
    %v130 = vld [vmem:[%s0 + $0x390] sm:$0xff]
    %v131 = vld [vmem:[%s0 + $0x398] sm:$0xff]
    %v132 = vld [vmem:[%s0 + $0x3a0] sm:$0xff]
    %v133 = vld [vmem:[%s0 + $0x3a8] sm:$0xff]
    %v134 = vld [vmem:[%s0 + $0x3b0] sm:$0xff]
    %v135 = vld [vmem:[%s0 + $0x3b8] sm:$0xff]
    %v136 = vld [vmem:[%s0 + $0x3c0] sm:$0xff]
    %v137 = vld [vmem:[%s0 + $0x3c8] sm:$0xff]
    %v138 = vld [vmem:[%s0 + $0x3d0] sm:$0xff]
    %v139 = vld [vmem:[%s0 + $0x3d8] sm:$0xff]
    %v140 = vld [vmem:[%s0 + $0x3e0] sm:$0xff]
    %v141 = vld [vmem:[%s0 + $0x3e8] sm:$0xff]
    %v142 = vld [vmem:[%s0 + $0x3f0] sm:$0xff]
    %v143 = vld [vmem:[%s0 + $0x3f8] sm:$0xff]
    %v144 = vld [vmem:[%s0 + $0x400] sm:$0xff]
    %v145 = vld [vmem:[%s0 + $0x408] sm:$0xff]
    %v146 = vld [vmem:[%s0 + $0x410] sm:$0xff]
    %v147 = vld [vmem:[%s0 + $0x418] sm:$0xff]
    %v148 = vld [vmem:[%s0 + $0x420] sm:$0xff]
    %v149 = vld [vmem:[%s0 + $0x428] sm:$0xff]
    %v150 = vld [vmem:[%s0 + $0x430] sm:$0xff]
    %v151 = vld [vmem:[%s0 + $0x438] sm:$0xff]
    %v152 = vld [vmem:[%s0 + $0x440] sm:$0xff]
    %v153 = vld [vmem:[%s0 + $0x448] sm:$0xff]
    %v154 = vld [vmem:[%s0 + $0x450] sm:$0xff]
    %v155 = vld [vmem:[%s0 + $0x458] sm:$0xff]
    %v156 = vld [vmem:[%s0 + $0x460] sm:$0xff]
    %v157 = vld [vmem:[%s0 + $0x468] sm:$0xff]
    %v158 = vld [vmem:[%s0 + $0x470] sm:$0xff]
    %v159 = vld [vmem:[%s0 + $0x478] sm:$0xff]
    %v160 = vld [vmem:[%s0 + $0x480] sm:$0xff]
    %v161 = vld [vmem:[%s0 + $0x488] sm:$0xff]
    %v162 = vld [vmem:[%s0 + $0x490] sm:$0xff]
    %v163 = vld [vmem:[%s0 + $0x498] sm:$0xff]
    %v164 = vld [vmem:[%s0 + $0x4a0] sm:$0xff]
    %v165 = vld [vmem:[%s0 + $0x4a8] sm:$0xff]
    %v166 = vld [vmem:[%s0 + $0x4b0] sm:$0xff]
    %v167 = vld [vmem:[%s0 + $0x4b8] sm:$0xff]
    %v168 = vld [vmem:[%s0 + $0x4c0] sm:$0xff]
    %v169 = vld [vmem:[%s0 + $0x4c8] sm:$0xff]
    %v170 = vld [vmem:[%s0 + $0x4d0] sm:$0xff]
    %v171 = vld [vmem:[%s0 + $0x4d8] sm:$0xff]
    %v172 = vld [vmem:[%s0 + $0x4e0] sm:$0xff]
    %v173 = vld [vmem:[%s0 + $0x4e8] sm:$0xff]
    %v174 = vld [vmem:[%s0 + $0x4f0] sm:$0xff]
    %v175 = vld [vmem:[%s0 + $0x4f8] sm:$0xff]
    %v176 = vld [vmem:[%s0 + $0x500] sm:$0xff]
    %v177 = vld [vmem:[%s0 + $0x508] sm:$0xff]
    %v178 = vld [vmem:[%s0 + $0x510] sm:$0xff]
    %v179 = vld [vmem:[%s0 + $0x518] sm:$0xff]
    %v180 = vld [vmem:[%s0 + $0x520] sm:$0xff]
    %v181 = vld [vmem:[%s0 + $0x528] sm:$0xff]
    %v182 = vld [vmem:[%s0 + $0x530] sm:$0xff]
    %v183 = vld [vmem:[%s0 + $0x538] sm:$0xff]
    %v184 = vld [vmem:[%s0 + $0x540] sm:$0xff]
    %v185 = vld [vmem:[%s0 + $0x548] sm:$0xff]
    %v186 = vld [vmem:[%s0 + $0x550] sm:$0xff]
    %v187 = vld [vmem:[%s0 + $0x558] sm:$0xff]
    %v188 = vld [vmem:[%s0 + $0x560] sm:$0xff]
    %v189 = vld [vmem:[%s0 + $0x568] sm:$0xff]
    %v190 = vld [vmem:[%s0 + $0x570] sm:$0xff]
    %v191 = vld [vmem:[%s0 + $0x578] sm:$0xff]
    %v192 = vld [vmem:[%s0 + $0x580] sm:$0xff]
    %v193 = vld [vmem:[%s0 + $0x588] sm:$0xff]
    %v194 = vld [vmem:[%s0 + $0x590] sm:$0xff]
    %v195 = vld [vmem:[%s0 + $0x598] sm:$0xff]
    %v196 = vld [vmem:[%s0 + $0x5a0] sm:$0xff]
    %v197 = vld [vmem:[%s0 + $0x5a8] sm:$0xff]
    %v198 = vld [vmem:[%s0 + $0x5b0] sm:$0xff]
    %v199 = vld [vmem:[%s0 + $0x5b8] sm:$0xff]
    %v200 = vld [vmem:[%s0 + $0x5c0] sm:$0xff]
    %v201 = vld [vmem:[%s0 + $0x5c8] sm:$0xff]
    %v202 = vld [vmem:[%s0 + $0x5d0] sm:$0xff]
    %v203 = vld [vmem:[%s0 + $0x5d8] sm:$0xff]
    %v204 = vld [vmem:[%s0 + $0x5e0] sm:$0xff]
    %v205 = vld [vmem:[%s0 + $0x5e8] sm:$0xff]
    %v206 = vld [vmem:[%s0 + $0x5f0] sm:$0xff]
    %v207 = vld [vmem:[%s0 + $0x5f8] sm:$0xff]
    %v208 = vld [vmem:[%s0 + $0x600] sm:$0xff]
    %v209 = vld [vmem:[%s0 + $0x608] sm:$0xff]
    %v210 = vld [vmem:[%s0 + $0x610] sm:$0xff]
    %v211 = vld [vmem:[%s0 + $0x618] sm:$0xff]
    %v212 = vld [vmem:[%s0 + $0x620] sm:$0xff]
    %v213 = vld [vmem:[%s0 + $0x628] sm:$0xff]
    %v214 = vld [vmem:[%s0 + $0x630] sm:$0xff]
    %v215 = vld [vmem:[%s0 + $0x638] sm:$0xff]
    %v216 = vld [vmem:[%s0 + $0x640] sm:$0xff]
    %v217 = vld [vmem:[%s0 + $0x648] sm:$0xff]
    %v218 = vld [vmem:[%s0 + $0x650] sm:$0xff]
    %v219 = vld [vmem:[%s0 + $0x658] sm:$0xff]
    %v220 = vld [vmem:[%s0 + $0x660] sm:$0xff]
    %v221 = vld [vmem:[%s0 + $0x668] sm:$0xff]
    %v222 = vld [vmem:[%s0 + $0x670] sm:$0xff]
    %v223 = vld [vmem:[%s0 + $0x678] sm:$0xff]
    %v224 = vld [vmem:[%s0 + $0x680] sm:$0xff]
    %v225 = vld [vmem:[%s0 + $0x688] sm:$0xff]
    %v226 = vld [vmem:[%s0 + $0x690] sm:$0xff]
    %v227 = vld [vmem:[%s0 + $0x698] sm:$0xff]
    %v228 = vld [vmem:[%s0 + $0x6a0] sm:$0xff]
    %v229 = vld [vmem:[%s0 + $0x6a8] sm:$0xff]
    %v230 = vld [vmem:[%s0 + $0x6b0] sm:$0xff]
    %v231 = vld [vmem:[%s0 + $0x6b8] sm:$0xff]
    %v232 = vld [vmem:[%s0 + $0x6c0] sm:$0xff]
    %v233 = vld [vmem:[%s0 + $0x6c8] sm:$0xff]
    %v234 = vld [vmem:[%s0 + $0x6d0] sm:$0xff]
    %v235 = vld [vmem:[%s0 + $0x6d8] sm:$0xff]
    %v236 = vld [vmem:[%s0 + $0x6e0] sm:$0xff]
    %v237 = vld [vmem:[%s0 + $0x6e8] sm:$0xff]
    %v238 = vld [vmem:[%s0 + $0x6f0] sm:$0xff]
    %v239 = vld [vmem:[%s0 + $0x6f8] sm:$0xff]
    %v240 = vpack.c.bf16 %v23, %v16
    %v241 = vpack.c.bf16 %v24, %v17
    %v242 = vpack.c.bf16 %v25, %v18
    %v243 = vpack.c.bf16 %v26, %v19
    %v244 = vpack.c.bf16 %v27, %v20
    %v245 = vpack.c.bf16 %v28, %v21
    %v246 = vpack.c.bf16 %v29, %v22
    %v247 = vpack.c.bf16 %v37, %v30
    %v248 = vpack.c.bf16 %v38, %v31
    %v249 = vpack.c.bf16 %v39, %v32
    %v250 = vpack.c.bf16 %v40, %v33
    %v251 = vpack.c.bf16 %v41, %v34
    %v252 = vpack.c.bf16 %v42, %v35
    %v253 = vpack.c.bf16 %v43, %v36
    %v254 = vpack.c.bf16 %v51, %v44
    %v255 = vpack.c.bf16 %v52, %v45
    %v256 = vpack.c.bf16 %v53, %v46
    %v257 = vpack.c.bf16 %v54, %v47
    %v258 = vpack.c.bf16 %v55, %v48
    %v259 = vpack.c.bf16 %v56, %v49
    %v260 = vpack.c.bf16 %v57, %v50
    %v261 = vpack.c.bf16 %v65, %v58
    %v262 = vpack.c.bf16 %v66, %v59
    %v263 = vpack.c.bf16 %v67, %v60
    %v264 = vpack.c.bf16 %v68, %v61
    %v265 = vpack.c.bf16 %v69, %v62
    %v266 = vpack.c.bf16 %v70, %v63
    %v267 = vpack.c.bf16 %v71, %v64
    %v268 = vpack.c.bf16 %v79, %v72
    %v269 = vpack.c.bf16 %v80, %v73
    %v270 = vpack.c.bf16 %v81, %v74
    %v271 = vpack.c.bf16 %v82, %v75
    %v272 = vpack.c.bf16 %v83, %v76
    %v273 = vpack.c.bf16 %v84, %v77
    %v274 = vpack.c.bf16 %v85, %v78
    %v275 = vpack.c.bf16 %v93, %v86
    %v276 = vpack.c.bf16 %v94, %v87
    %v277 = vpack.c.bf16 %v95, %v88
    %v278 = vpack.c.bf16 %v96, %v89
    %v279 = vpack.c.bf16 %v97, %v90
    %v280 = vpack.c.bf16 %v98, %v91
    %v281 = vpack.c.bf16 %v99, %v92
    %v282 = vpack.c.bf16 %v107, %v100
    %v283 = vpack.c.bf16 %v108, %v101
    %v284 = vpack.c.bf16 %v109, %v102
    %v285 = vpack.c.bf16 %v110, %v103
    %v286 = vpack.c.bf16 %v111, %v104
    %v287 = vpack.c.bf16 %v112, %v105
    %v288 = vpack.c.bf16 %v113, %v106
    %v289 = vpack.c.bf16 %v121, %v114
    %v290 = vpack.c.bf16 %v122, %v115
    %v291 = vpack.c.bf16 %v123, %v116
    %v292 = vpack.c.bf16 %v124, %v117
    %v293 = vpack.c.bf16 %v125, %v118
    %v294 = vpack.c.bf16 %v126, %v119
    %v295 = vpack.c.bf16 %v127, %v120
    %v296 = vpack.c.bf16 %v135, %v128
    %v297 = vpack.c.bf16 %v136, %v129
    %v298 = vpack.c.bf16 %v137, %v130
    %v299 = vpack.c.bf16 %v138, %v131
    %v300 = vpack.c.bf16 %v139, %v132
    %v301 = vpack.c.bf16 %v140, %v133
    %v302 = vpack.c.bf16 %v141, %v134
    %v303 = vpack.c.bf16 %v149, %v142
    %v304 = vpack.c.bf16 %v150, %v143
    %v305 = vpack.c.bf16 %v151, %v144
    %v306 = vpack.c.bf16 %v152, %v145
    %v307 = vpack.c.bf16 %v153, %v146
    %v308 = vpack.c.bf16 %v154, %v147
    %v309 = vpack.c.bf16 %v155, %v148
    %v310 = vpack.c.bf16 %v163, %v156
    %v311 = vpack.c.bf16 %v164, %v157
    %v312 = vpack.c.bf16 %v165, %v158
    %v313 = vpack.c.bf16 %v166, %v159
    %v314 = vpack.c.bf16 %v167, %v160
    %v315 = vpack.c.bf16 %v168, %v161
    %v316 = vpack.c.bf16 %v169, %v162
    %v317 = vpack.c.bf16 %v177, %v170
    %v318 = vpack.c.bf16 %v178, %v171
    %v319 = vpack.c.bf16 %v179, %v172
    %v320 = vpack.c.bf16 %v180, %v173
    %v321 = vpack.c.bf16 %v181, %v174
    %v322 = vpack.c.bf16 %v182, %v175
    %v323 = vpack.c.bf16 %v183, %v176
    %v324 = vpack.c.bf16 %v191, %v184
    %v325 = vpack.c.bf16 %v192, %v185
    %v326 = vpack.c.bf16 %v193, %v186
    %v327 = vpack.c.bf16 %v194, %v187
    %v328 = vpack.c.bf16 %v195, %v188
    %v329 = vpack.c.bf16 %v196, %v189
    %v330 = vpack.c.bf16 %v197, %v190
    %v331 = vpack.c.bf16 %v205, %v198
    %v332 = vpack.c.bf16 %v206, %v199
    %v333 = vpack.c.bf16 %v207, %v200
    %v334 = vpack.c.bf16 %v208, %v201
    %v335 = vpack.c.bf16 %v209, %v202
    %v336 = vpack.c.bf16 %v210, %v203
    %v337 = vpack.c.bf16 %v211, %v204
    %v338 = vpack.c.bf16 %v219, %v212
    %v339 = vpack.c.bf16 %v220, %v213
    %v340 = vpack.c.bf16 %v221, %v214
    %v341 = vpack.c.bf16 %v222, %v215
    %v342 = vpack.c.bf16 %v223, %v216
    %v343 = vpack.c.bf16 %v224, %v217
    %v344 = vpack.c.bf16 %v225, %v218
    %v345 = vpack.c.bf16 %v233, %v226
    %v346 = vpack.c.bf16 %v234, %v227
    %v347 = vpack.c.bf16 %v235, %v228
    %v348 = vpack.c.bf16 %v236, %v229
    %v349 = vpack.c.bf16 %v237, %v230
    %v350 = vpack.c.bf16 %v238, %v231
    %v351 = vpack.c.bf16 %v239, %v232
    %v352 = vld [vmem:[%s1] sm:$0xf]
    %v353 = vld [vmem:[%s1 + $0x4] sm:$0xf]
    %v354 = vld [vmem:[%s1 + $0x8] sm:$0xf]
    %v355 = vld [vmem:[%s1 + $0xc] sm:$0xf]
    %v356 = vld [vmem:[%s1 + $0x10] sm:$0xf]
    %v357 = vld [vmem:[%s1 + $0x14] sm:$0xf]
    %v358 = vld [vmem:[%s1 + $0x18] sm:$0xf]
    %v359 = vld [vmem:[%s1 + $0x1c] sm:$0xf]
    %v360 = vld [vmem:[%s1 + $0x20] sm:$0xf]
    %v361 = vld [vmem:[%s1 + $0x24] sm:$0xf]
    %v362 = vld [vmem:[%s1 + $0x28] sm:$0xf]
    %v363 = vld [vmem:[%s1 + $0x2c] sm:$0xf]
    %v364 = vld [vmem:[%s1 + $0x30] sm:$0xf]
    %v365 = vld [vmem:[%s1 + $0x34] sm:$0xf]
    %v366 = vld [vmem:[%s1 + $0x38] sm:$0xf]
    %v367 = vld [vmem:[%s1 + $0x3c] sm:$0xf]
    %v368 = vld [vmem:[%s1 + $0x40] sm:$0xf]
    %v369 = vld [vmem:[%s1 + $0x44] sm:$0xf]
    %v370 = vld [vmem:[%s1 + $0x48] sm:$0xf]
    %v371 = vld [vmem:[%s1 + $0x4c] sm:$0xf]
    %v372 = vld [vmem:[%s1 + $0x50] sm:$0xf]
    %v373 = vld [vmem:[%s1 + $0x54] sm:$0xf]
    %v374 = vld [vmem:[%s1 + $0x58] sm:$0xf]
    %v375 = vld [vmem:[%s1 + $0x5c] sm:$0xf]
    %v376 = vld [vmem:[%s1 + $0x60] sm:$0xf]
    %v377 = vld [vmem:[%s1 + $0x64] sm:$0xf]
    %v378 = vld [vmem:[%s1 + $0x68] sm:$0xf]
    %v379 = vld [vmem:[%s1 + $0x6c] sm:$0xf]
    %v380 = vld [vmem:[%s1 + $0x70] sm:$0xf]
    %v381 = vld [vmem:[%s1 + $0x74] sm:$0xf]
    %v382 = vld [vmem:[%s1 + $0x78] sm:$0xf]
    %v383 = vld [vmem:[%s1 + $0x7c] sm:$0xf]
    %v384 = vld [vmem:[%s1 + $0x80] sm:$0xf]
    %v385 = vld [vmem:[%s1 + $0x84] sm:$0xf]
    %v386 = vld [vmem:[%s1 + $0x88] sm:$0xf]
    %v387 = vld [vmem:[%s1 + $0x8c] sm:$0xf]
    %v388 = vld [vmem:[%s1 + $0x90] sm:$0xf]
    %v389 = vld [vmem:[%s1 + $0x94] sm:$0xf]
    %v390 = vld [vmem:[%s1 + $0x98] sm:$0xf]
    %v391 = vld [vmem:[%s1 + $0x9c] sm:$0xf]
    %v392 = vld [vmem:[%s1 + $0xa0] sm:$0xf]
    %v393 = vld [vmem:[%s1 + $0xa4] sm:$0xf]
    %v394 = vld [vmem:[%s1 + $0xa8] sm:$0xf]
    %v395 = vld [vmem:[%s1 + $0xac] sm:$0xf]
    %v396 = vld [vmem:[%s1 + $0xb0] sm:$0xf]
    %v397 = vld [vmem:[%s1 + $0xb4] sm:$0xf]
    %v398 = vld [vmem:[%s1 + $0xb8] sm:$0xf]
    %v399 = vld [vmem:[%s1 + $0xbc] sm:$0xf]
    %v400 = vld [vmem:[%s1 + $0xc0] sm:$0xf]
    %v401 = vld [vmem:[%s1 + $0xc4] sm:$0xf]
    %v402 = vld [vmem:[%s1 + $0xc8] sm:$0xf]
    %v403 = vld [vmem:[%s1 + $0xcc] sm:$0xf]
    %v404 = vld [vmem:[%s1 + $0xd0] sm:$0xf]
    %v405 = vld [vmem:[%s1 + $0xd4] sm:$0xf]
    %v406 = vld [vmem:[%s1 + $0xd8] sm:$0xf]
    %v407 = vld [vmem:[%s1 + $0xdc] sm:$0xf]
    %v408 = vld [vmem:[%s1 + $0xe0] sm:$0xf]
    %v409 = vld [vmem:[%s1 + $0xe4] sm:$0xf]
    %v410 = vld [vmem:[%s1 + $0xe8] sm:$0xf]
    %v411 = vld [vmem:[%s1 + $0xec] sm:$0xf]
    %v412 = vld [vmem:[%s1 + $0xf0] sm:$0xf]
    %v413 = vld [vmem:[%s1 + $0xf4] sm:$0xf]
    %v414 = vld [vmem:[%s1 + $0xf8] sm:$0xf]
    %v415 = vld [vmem:[%s1 + $0xfc] sm:$0xf]
    %v416 = vld [vmem:[%s1 + $0x100] sm:$0xf]
    %v417 = vld [vmem:[%s1 + $0x104] sm:$0xf]
    %v418 = vld [vmem:[%s1 + $0x108] sm:$0xf]
    %v419 = vld [vmem:[%s1 + $0x10c] sm:$0xf]
    %v420 = vld [vmem:[%s1 + $0x110] sm:$0xf]
    %v421 = vld [vmem:[%s1 + $0x114] sm:$0xf]
    %v422 = vld [vmem:[%s1 + $0x118] sm:$0xf]
    %v423 = vld [vmem:[%s1 + $0x11c] sm:$0xf]
    %v424 = vld [vmem:[%s1 + $0x120] sm:$0xf]
    %v425 = vld [vmem:[%s1 + $0x124] sm:$0xf]
    %v426 = vld [vmem:[%s1 + $0x128] sm:$0xf]
    %v427 = vld [vmem:[%s1 + $0x12c] sm:$0xf]
    %v428 = vld [vmem:[%s1 + $0x130] sm:$0xf]
    %v429 = vld [vmem:[%s1 + $0x134] sm:$0xf]
    %v430 = vld [vmem:[%s1 + $0x138] sm:$0xf]
    %v431 = vld [vmem:[%s1 + $0x13c] sm:$0xf]
    %v432 = vld [vmem:[%s1 + $0x140] sm:$0xf]
    %v433 = vld [vmem:[%s1 + $0x144] sm:$0xf]
    %v434 = vld [vmem:[%s1 + $0x148] sm:$0xf]
    %v435 = vld [vmem:[%s1 + $0x14c] sm:$0xf]
    %v436 = vld [vmem:[%s1 + $0x150] sm:$0xf]
    %v437 = vld [vmem:[%s1 + $0x154] sm:$0xf]
    %v438 = vld [vmem:[%s1 + $0x158] sm:$0xf]
    %v439 = vld [vmem:[%s1 + $0x15c] sm:$0xf]
    %v440 = vld [vmem:[%s1 + $0x160] sm:$0xf]
    %v441 = vld [vmem:[%s1 + $0x164] sm:$0xf]
    %v442 = vld [vmem:[%s1 + $0x168] sm:$0xf]
    %v443 = vld [vmem:[%s1 + $0x16c] sm:$0xf]
    %v444 = vld [vmem:[%s1 + $0x170] sm:$0xf]
    %v445 = vld [vmem:[%s1 + $0x174] sm:$0xf]
    %v446 = vld [vmem:[%s1 + $0x178] sm:$0xf]
    %v447 = vld [vmem:[%s1 + $0x17c] sm:$0xf]
    %v448 = vld [vmem:[%s1 + $0x180] sm:$0xf]
    %v449 = vld [vmem:[%s1 + $0x184] sm:$0xf]
    %v548 = vunpack.c.l.b16 %v352
    %v549 = vunpack.c.l.b16 %v353
    %v550 = vunpack.c.l.b16 %v354
    %v551 = vunpack.c.l.b16 %v355
    %v552 = vunpack.c.l.b16 %v356
    %v553 = vunpack.c.l.b16 %v357
    %v554 = vunpack.c.l.b16 %v358
    %v555 = vunpack.c.l.b16 %v359
    %v556 = vunpack.c.l.b16 %v360
    %v557 = vunpack.c.l.b16 %v361
    %v558 = vunpack.c.l.b16 %v362
    %v559 = vunpack.c.l.b16 %v363
    %v560 = vunpack.c.l.b16 %v364
    %v561 = vunpack.c.l.b16 %v365
    %v562 = vunpack.c.l.b16 %v366
    %v563 = vunpack.c.l.b16 %v367
    %v564 = vunpack.c.l.b16 %v368
    %v565 = vunpack.c.l.b16 %v369
    %v566 = vunpack.c.l.b16 %v370
    %v567 = vunpack.c.l.b16 %v371
    %v568 = vunpack.c.l.b16 %v372
    %v569 = vunpack.c.l.b16 %v373
    %v570 = vunpack.c.l.b16 %v374
    %v571 = vunpack.c.l.b16 %v375
    %v572 = vunpack.c.l.b16 %v376
    %v573 = vunpack.c.l.b16 %v377
    %v574 = vunpack.c.l.b16 %v378
    %v575 = vunpack.c.l.b16 %v379
    %v576 = vunpack.c.l.b16 %v380
    %v577 = vunpack.c.l.b16 %v381
    %v578 = vunpack.c.l.b16 %v382
    %v579 = vunpack.c.l.b16 %v383
    %v580 = vunpack.c.l.b16 %v384
    %v581 = vunpack.c.l.b16 %v385
    %v582 = vunpack.c.l.b16 %v386
    %v583 = vunpack.c.l.b16 %v387
    %v584 = vunpack.c.l.b16 %v388
    %v585 = vunpack.c.l.b16 %v389
    %v586 = vunpack.c.l.b16 %v390
    %v587 = vunpack.c.l.b16 %v391
    %v588 = vunpack.c.l.b16 %v392
    %v589 = vunpack.c.l.b16 %v393
    %v590 = vunpack.c.l.b16 %v394
    %v591 = vunpack.c.l.b16 %v395
    %v592 = vunpack.c.l.b16 %v396
    %v593 = vunpack.c.l.b16 %v397
    %v594 = vunpack.c.l.b16 %v398
    %v595 = vunpack.c.l.b16 %v399
    %v596 = vunpack.c.l.b16 %v400
    %v597 = vunpack.c.l.b16 %v401
    %v598 = vunpack.c.l.b16 %v402
    %v599 = vunpack.c.l.b16 %v403
    %v600 = vunpack.c.l.b16 %v404
    %v601 = vunpack.c.l.b16 %v405
    %v602 = vunpack.c.l.b16 %v406
    %v603 = vunpack.c.l.b16 %v407
    %v604 = vunpack.c.l.b16 %v408
    %v605 = vunpack.c.l.b16 %v409
    %v606 = vunpack.c.l.b16 %v410
    %v607 = vunpack.c.l.b16 %v411
    %v608 = vunpack.c.l.b16 %v412
    %v609 = vunpack.c.l.b16 %v413
    %v610 = vunpack.c.l.b16 %v414
    %v611 = vunpack.c.l.b16 %v415
    %v612 = vunpack.c.l.b16 %v416
    %v613 = vunpack.c.l.b16 %v417
    %v614 = vunpack.c.l.b16 %v418
    %v615 = vunpack.c.l.b16 %v419
    %v616 = vunpack.c.l.b16 %v420
    %v617 = vunpack.c.l.b16 %v421
    %v618 = vunpack.c.l.b16 %v422
    %v619 = vunpack.c.l.b16 %v423
    %v620 = vunpack.c.l.b16 %v424
    %v621 = vunpack.c.l.b16 %v425
    %v622 = vunpack.c.l.b16 %v426
    %v623 = vunpack.c.l.b16 %v427
    %v624 = vunpack.c.l.b16 %v428
    %v625 = vunpack.c.l.b16 %v429
    %v626 = vunpack.c.l.b16 %v430
    %v627 = vunpack.c.l.b16 %v431
    %v628 = vunpack.c.l.b16 %v432
    %v629 = vunpack.c.l.b16 %v433
    %v630 = vunpack.c.l.b16 %v434
    %v631 = vunpack.c.l.b16 %v435
    %v632 = vunpack.c.l.b16 %v436
    %v633 = vunpack.c.l.b16 %v437
    %v634 = vunpack.c.l.b16 %v438
    %v635 = vunpack.c.l.b16 %v439
    %v636 = vunpack.c.l.b16 %v440
    %v637 = vunpack.c.l.b16 %v441
    %v638 = vunpack.c.l.b16 %v442
    %v639 = vunpack.c.l.b16 %v443
    %v640 = vunpack.c.l.b16 %v444
    %v641 = vunpack.c.l.b16 %v445
    %v642 = vunpack.c.l.b16 %v446
    %v643 = vunpack.c.l.b16 %v447
    %v644 = vunpack.c.l.b16 %v448
    %v645 = vunpack.c.l.b16 %v449
    %v646 = vpack.c.b16 %v549, %v548
    %v647 = vpack.c.b16 %v551, %v550
    %v648 = vpack.c.b16 %v553, %v552
    %v649 = vpack.c.b16 %v555, %v554
    %v650 = vpack.c.b16 %v557, %v556
    %v651 = vpack.c.b16 %v559, %v558
    %v652 = vpack.c.b16 %v561, %v560
    %v653 = vpack.c.b16 %v563, %v562
    %v654 = vpack.c.b16 %v565, %v564
    %v655 = vpack.c.b16 %v567, %v566
    %v656 = vpack.c.b16 %v569, %v568
    %v657 = vpack.c.b16 %v571, %v570
    %v658 = vpack.c.b16 %v573, %v572
    %v659 = vpack.c.b16 %v575, %v574
    %v660 = vpack.c.b16 %v577, %v576
    %v661 = vpack.c.b16 %v579, %v578
    %v662 = vpack.c.b16 %v581, %v580
    %v663 = vpack.c.b16 %v583, %v582
    %v664 = vpack.c.b16 %v585, %v584
    %v665 = vpack.c.b16 %v587, %v586
    %v666 = vpack.c.b16 %v589, %v588
    %v667 = vpack.c.b16 %v591, %v590
    %v668 = vpack.c.b16 %v593, %v592
    %v669 = vpack.c.b16 %v595, %v594
    %v670 = vpack.c.b16 %v597, %v596
    %v671 = vpack.c.b16 %v599, %v598
    %v672 = vpack.c.b16 %v601, %v600
    %v673 = vpack.c.b16 %v603, %v602
    %v674 = vpack.c.b16 %v605, %v604
    %v675 = vpack.c.b16 %v607, %v606
    %v676 = vpack.c.b16 %v609, %v608
    %v677 = vpack.c.b16 %v611, %v610
    %v678 = vpack.c.b16 %v613, %v612
    %v679 = vpack.c.b16 %v615, %v614
    %v680 = vpack.c.b16 %v617, %v616
    %v681 = vpack.c.b16 %v619, %v618
    %v682 = vpack.c.b16 %v621, %v620
    %v683 = vpack.c.b16 %v623, %v622
    %v684 = vpack.c.b16 %v625, %v624
    %v685 = vpack.c.b16 %v627, %v626
    %v686 = vpack.c.b16 %v629, %v628
    %v687 = vpack.c.b16 %v631, %v630
    %v688 = vpack.c.b16 %v633, %v632
    %v689 = vpack.c.b16 %v635, %v634
    %v690 = vpack.c.b16 %v637, %v636
    %v691 = vpack.c.b16 %v639, %v638
    %v692 = vpack.c.b16 %v641, %v640
    %v693 = vpack.c.b16 %v643, %v642
    %v694 = vpack.c.b16 %v645, %v644
    %vm744 = vcmask 130048
    %v746 = vsel %vm744, %v246, 0
    %v749 = vsel %vm744, %v253, 0
    %v752 = vsel %vm744, %v260, 0
    %v755 = vsel %vm744, %v267, 0
    %v758 = vsel %vm744, %v274, 0
    %v761 = vsel %vm744, %v281, 0
    %v764 = vsel %vm744, %v288, 0
    %v767 = vsel %vm744, %v295, 0
    %v770 = vsel %vm744, %v302, 0
    %v773 = vsel %vm744, %v309, 0
    %v776 = vsel %vm744, %v316, 0
    %v779 = vsel %vm744, %v323, 0
    %v782 = vsel %vm744, %v330, 0
    %v785 = vsel %vm744, %v337, 0
    %v788 = vsel %vm744, %v344, 0
    %v791 = vsel %vm744, %v351, 0
    %793 = vmatpush.bf16.msra.mxu0 %v653
    %794 = vmatpush.bf16.msra.mxu0 %v652
    %795 = vmatpush.bf16.msra.mxu0 %v651
    %796 = vmatpush.bf16.msra.mxu0 %v650
    %797 = vmatpush.bf16.msra.mxu0 %v649
    %798 = vmatpush.bf16.msra.mxu0 %v648
    %799 = vmatpush.bf16.msra.mxu0 %v647
    %800 = vmatpush.bf16.msra.mxu0 %v646
    %801 = vmatmul.bf16.gmra.mxu0 %v240
    %v802 = vpop.f32.mrf.mxu0
    %v803 = vadd.f32 0.0, %v802
    %v804 = vpop.f32.mrf.mxu0
    %v805 = vadd.f32 0.0, %v804
    %806 = vmatmul.bf16.gmra.mxu0 %v247
    %v807 = vpop.f32.mrf.mxu0
    %v808 = vadd.f32 0.0, %v807
    %v809 = vpop.f32.mrf.mxu0
    %v810 = vadd.f32 0.0, %v809
    %811 = vmatmul.bf16.gmra.mxu0 %v254
    %v812 = vpop.f32.mrf.mxu0
    %v813 = vadd.f32 0.0, %v812
    %v814 = vpop.f32.mrf.mxu0
    %v815 = vadd.f32 0.0, %v814
    %816 = vmatmul.bf16.gmra.mxu0 %v261
    %v817 = vpop.f32.mrf.mxu0
    %v818 = vadd.f32 0.0, %v817
    %v819 = vpop.f32.mrf.mxu0
    %v820 = vadd.f32 0.0, %v819
    %821 = vmatmul.bf16.gmra.mxu0 %v268
    %v822 = vpop.f32.mrf.mxu0
    %v823 = vadd.f32 0.0, %v822
    %v824 = vpop.f32.mrf.mxu0
    %v825 = vadd.f32 0.0, %v824
    %826 = vmatmul.bf16.gmra.mxu0 %v275
    %v827 = vpop.f32.mrf.mxu0
    %v828 = vadd.f32 0.0, %v827
    %v829 = vpop.f32.mrf.mxu0
    %v830 = vadd.f32 0.0, %v829
    %831 = vmatmul.bf16.gmra.mxu0 %v282
    %v832 = vpop.f32.mrf.mxu0
    %v833 = vadd.f32 0.0, %v832
    %v834 = vpop.f32.mrf.mxu0
    %v835 = vadd.f32 0.0, %v834
    %836 = vmatmul.bf16.gmra.mxu0 %v289
    %v837 = vpop.f32.mrf.mxu0
    %v838 = vadd.f32 0.0, %v837
    %v839 = vpop.f32.mrf.mxu0
    %v840 = vadd.f32 0.0, %v839
    %841 = vmatmul.bf16.gmra.mxu0 %v296
    %v842 = vpop.f32.mrf.mxu0
    %v843 = vadd.f32 0.0, %v842
    %v844 = vpop.f32.mrf.mxu0
    %v845 = vadd.f32 0.0, %v844
    %846 = vmatmul.bf16.gmra.mxu0 %v303
    %v847 = vpop.f32.mrf.mxu0
    %v848 = vadd.f32 0.0, %v847
    %v849 = vpop.f32.mrf.mxu0
    %v850 = vadd.f32 0.0, %v849
    %851 = vmatmul.bf16.gmra.mxu0 %v310
    %v852 = vpop.f32.mrf.mxu0
    %v853 = vadd.f32 0.0, %v852
    %v854 = vpop.f32.mrf.mxu0
    %v855 = vadd.f32 0.0, %v854
    %856 = vmatmul.bf16.gmra.mxu0 %v317
    %v857 = vpop.f32.mrf.mxu0
    %v858 = vadd.f32 0.0, %v857
    %v859 = vpop.f32.mrf.mxu0
    %v860 = vadd.f32 0.0, %v859
    %861 = vmatmul.bf16.gmra.mxu0 %v324
    %v862 = vpop.f32.mrf.mxu0
    %v863 = vadd.f32 0.0, %v862
    %v864 = vpop.f32.mrf.mxu0
    %v865 = vadd.f32 0.0, %v864
    %866 = vmatmul.bf16.gmra.mxu0 %v331
    %v867 = vpop.f32.mrf.mxu0
    %v868 = vadd.f32 0.0, %v867
    %v869 = vpop.f32.mrf.mxu0
    %v870 = vadd.f32 0.0, %v869
    %871 = vmatmul.bf16.gmra.mxu0 %v338
    %v872 = vpop.f32.mrf.mxu0
    %v873 = vadd.f32 0.0, %v872
    %v874 = vpop.f32.mrf.mxu0
    %v875 = vadd.f32 0.0, %v874
    %876 = vmatmul.bf16.gmra.mxu0 %v345
    %v877 = vpop.f32.mrf.mxu0
    %v878 = vadd.f32 0.0, %v877
    %v879 = vpop.f32.mrf.mxu0
    %v880 = vadd.f32 0.0, %v879
    %881 = vdwg.mxu0
    %882 = vmatpush.bf16.msra.mxu0 %v661
    %883 = vmatpush.bf16.msra.mxu0 %v660
    %884 = vmatpush.bf16.msra.mxu0 %v659
    %885 = vmatpush.bf16.msra.mxu0 %v658
    %886 = vmatpush.bf16.msra.mxu0 %v657
    %887 = vmatpush.bf16.msra.mxu0 %v656
    %888 = vmatpush.bf16.msra.mxu0 %v655
    %889 = vmatpush.bf16.msra.mxu0 %v654
    %890 = vmatmul.bf16.gmra.mxu0 %v241
    %v891 = vpop.f32.mrf.mxu0
    %v892 = vadd.f32 %v803, %v891
    %v893 = vpop.f32.mrf.mxu0
    %v894 = vadd.f32 %v805, %v893
    %895 = vmatmul.bf16.gmra.mxu0 %v248
    %v896 = vpop.f32.mrf.mxu0
    %v897 = vadd.f32 %v808, %v896
    %v898 = vpop.f32.mrf.mxu0
    %v899 = vadd.f32 %v810, %v898
    %900 = vmatmul.bf16.gmra.mxu0 %v255
    %v901 = vpop.f32.mrf.mxu0
    %v902 = vadd.f32 %v813, %v901
    %v903 = vpop.f32.mrf.mxu0
    %v904 = vadd.f32 %v815, %v903
    %905 = vmatmul.bf16.gmra.mxu0 %v262
    %v906 = vpop.f32.mrf.mxu0
    %v907 = vadd.f32 %v818, %v906
    %v908 = vpop.f32.mrf.mxu0
    %v909 = vadd.f32 %v820, %v908
    %910 = vmatmul.bf16.gmra.mxu0 %v269
    %v911 = vpop.f32.mrf.mxu0
    %v912 = vadd.f32 %v823, %v911
    %v913 = vpop.f32.mrf.mxu0
    %v914 = vadd.f32 %v825, %v913
    %915 = vmatmul.bf16.gmra.mxu0 %v276
    %v916 = vpop.f32.mrf.mxu0
    %v917 = vadd.f32 %v828, %v916
    %v918 = vpop.f32.mrf.mxu0
    %v919 = vadd.f32 %v830, %v918
    %920 = vmatmul.bf16.gmra.mxu0 %v283
    %v921 = vpop.f32.mrf.mxu0
    %v922 = vadd.f32 %v833, %v921
    %v923 = vpop.f32.mrf.mxu0
    %v924 = vadd.f32 %v835, %v923
    %925 = vmatmul.bf16.gmra.mxu0 %v290
    %v926 = vpop.f32.mrf.mxu0
    %v927 = vadd.f32 %v838, %v926
    %v928 = vpop.f32.mrf.mxu0
    %v929 = vadd.f32 %v840, %v928
    %930 = vmatmul.bf16.gmra.mxu0 %v297
    %v931 = vpop.f32.mrf.mxu0
    %v932 = vadd.f32 %v843, %v931
    %v933 = vpop.f32.mrf.mxu0
    %v934 = vadd.f32 %v845, %v933
    %935 = vmatmul.bf16.gmra.mxu0 %v304
    %v936 = vpop.f32.mrf.mxu0
    %v937 = vadd.f32 %v848, %v936
    %v938 = vpop.f32.mrf.mxu0
    %v939 = vadd.f32 %v850, %v938
    %940 = vmatmul.bf16.gmra.mxu0 %v311
    %v941 = vpop.f32.mrf.mxu0
    %v942 = vadd.f32 %v853, %v941
    %v943 = vpop.f32.mrf.mxu0
    %v944 = vadd.f32 %v855, %v943
    %945 = vmatmul.bf16.gmra.mxu0 %v318
    %v946 = vpop.f32.mrf.mxu0
    %v947 = vadd.f32 %v858, %v946
    %v948 = vpop.f32.mrf.mxu0
    %v949 = vadd.f32 %v860, %v948
    %950 = vmatmul.bf16.gmra.mxu0 %v325
    %v951 = vpop.f32.mrf.mxu0
    %v952 = vadd.f32 %v863, %v951
    %v953 = vpop.f32.mrf.mxu0
    %v954 = vadd.f32 %v865, %v953
    %955 = vmatmul.bf16.gmra.mxu0 %v332
    %v956 = vpop.f32.mrf.mxu0
    %v957 = vadd.f32 %v868, %v956
    %v958 = vpop.f32.mrf.mxu0
    %v959 = vadd.f32 %v870, %v958
    %960 = vmatmul.bf16.gmra.mxu0 %v339
    %v961 = vpop.f32.mrf.mxu0
    %v962 = vadd.f32 %v873, %v961
    %v963 = vpop.f32.mrf.mxu0
    %v964 = vadd.f32 %v875, %v963
    %965 = vmatmul.bf16.gmra.mxu0 %v346
    %v966 = vpop.f32.mrf.mxu0
    %v967 = vadd.f32 %v878, %v966
    %v968 = vpop.f32.mrf.mxu0
    %v969 = vadd.f32 %v880, %v968
    %970 = vdwg.mxu0
    %971 = vmatpush.bf16.msra.mxu0 %v669
    %972 = vmatpush.bf16.msra.mxu0 %v668
    %973 = vmatpush.bf16.msra.mxu0 %v667
    %974 = vmatpush.bf16.msra.mxu0 %v666
    %975 = vmatpush.bf16.msra.mxu0 %v665
    %976 = vmatpush.bf16.msra.mxu0 %v664
    %977 = vmatpush.bf16.msra.mxu0 %v663
    %978 = vmatpush.bf16.msra.mxu0 %v662
    %979 = vmatmul.bf16.gmra.mxu0 %v242
    %v980 = vpop.f32.mrf.mxu0
    %v981 = vadd.f32 %v892, %v980
    %v982 = vpop.f32.mrf.mxu0
    %v983 = vadd.f32 %v894, %v982
    %984 = vmatmul.bf16.gmra.mxu0 %v249
    %v985 = vpop.f32.mrf.mxu0
    %v986 = vadd.f32 %v897, %v985
    %v987 = vpop.f32.mrf.mxu0
    %v988 = vadd.f32 %v899, %v987
    %989 = vmatmul.bf16.gmra.mxu0 %v256
    %v990 = vpop.f32.mrf.mxu0
    %v991 = vadd.f32 %v902, %v990
    %v992 = vpop.f32.mrf.mxu0
    %v993 = vadd.f32 %v904, %v992
    %994 = vmatmul.bf16.gmra.mxu0 %v263
    %v995 = vpop.f32.mrf.mxu0
    %v996 = vadd.f32 %v907, %v995
    %v997 = vpop.f32.mrf.mxu0
    %v998 = vadd.f32 %v909, %v997
    %999 = vmatmul.bf16.gmra.mxu0 %v270
    %v1000 = vpop.f32.mrf.mxu0
    %v1001 = vadd.f32 %v912, %v1000
    %v1002 = vpop.f32.mrf.mxu0
    %v1003 = vadd.f32 %v914, %v1002
    %1004 = vmatmul.bf16.gmra.mxu0 %v277
    %v1005 = vpop.f32.mrf.mxu0
    %v1006 = vadd.f32 %v917, %v1005
    %v1007 = vpop.f32.mrf.mxu0
    %v1008 = vadd.f32 %v919, %v1007
    %1009 = vmatmul.bf16.gmra.mxu0 %v284
    %v1010 = vpop.f32.mrf.mxu0
    %v1011 = vadd.f32 %v922, %v1010
    %v1012 = vpop.f32.mrf.mxu0
    %v1013 = vadd.f32 %v924, %v1012
    %1014 = vmatmul.bf16.gmra.mxu0 %v291
    %v1015 = vpop.f32.mrf.mxu0
    %v1016 = vadd.f32 %v927, %v1015
    %v1017 = vpop.f32.mrf.mxu0
    %v1018 = vadd.f32 %v929, %v1017
    %1019 = vmatmul.bf16.gmra.mxu0 %v298
    %v1020 = vpop.f32.mrf.mxu0
    %v1021 = vadd.f32 %v932, %v1020
    %v1022 = vpop.f32.mrf.mxu0
    %v1023 = vadd.f32 %v934, %v1022
    %1024 = vmatmul.bf16.gmra.mxu0 %v305
    %v1025 = vpop.f32.mrf.mxu0
    %v1026 = vadd.f32 %v937, %v1025
    %v1027 = vpop.f32.mrf.mxu0
    %v1028 = vadd.f32 %v939, %v1027
    %1029 = vmatmul.bf16.gmra.mxu0 %v312
    %v1030 = vpop.f32.mrf.mxu0
    %v1031 = vadd.f32 %v942, %v1030
    %v1032 = vpop.f32.mrf.mxu0
    %v1033 = vadd.f32 %v944, %v1032
    %1034 = vmatmul.bf16.gmra.mxu0 %v319
    %v1035 = vpop.f32.mrf.mxu0
    %v1036 = vadd.f32 %v947, %v1035
    %v1037 = vpop.f32.mrf.mxu0
    %v1038 = vadd.f32 %v949, %v1037
    %1039 = vmatmul.bf16.gmra.mxu0 %v326
    %v1040 = vpop.f32.mrf.mxu0
    %v1041 = vadd.f32 %v952, %v1040
    %v1042 = vpop.f32.mrf.mxu0
    %v1043 = vadd.f32 %v954, %v1042
    %1044 = vmatmul.bf16.gmra.mxu0 %v333
    %v1045 = vpop.f32.mrf.mxu0
    %v1046 = vadd.f32 %v957, %v1045
    %v1047 = vpop.f32.mrf.mxu0
    %v1048 = vadd.f32 %v959, %v1047
    %1049 = vmatmul.bf16.gmra.mxu0 %v340
    %v1050 = vpop.f32.mrf.mxu0
    %v1051 = vadd.f32 %v962, %v1050
    %v1052 = vpop.f32.mrf.mxu0
    %v1053 = vadd.f32 %v964, %v1052
    %1054 = vmatmul.bf16.gmra.mxu0 %v347
    %v1055 = vpop.f32.mrf.mxu0
    %v1056 = vadd.f32 %v967, %v1055
    %v1057 = vpop.f32.mrf.mxu0
    %v1058 = vadd.f32 %v969, %v1057
    %1059 = vdwg.mxu0
    %1060 = vmatpush.bf16.msra.mxu0 %v677
    %1061 = vmatpush.bf16.msra.mxu0 %v676
    %1062 = vmatpush.bf16.msra.mxu0 %v675
    %1063 = vmatpush.bf16.msra.mxu0 %v674
    %1064 = vmatpush.bf16.msra.mxu0 %v673
    %1065 = vmatpush.bf16.msra.mxu0 %v672
    %1066 = vmatpush.bf16.msra.mxu0 %v671
    %1067 = vmatpush.bf16.msra.mxu0 %v670
    %1068 = vmatmul.bf16.gmra.mxu0 %v243
    %v1069 = vpop.f32.mrf.mxu0
    %v1070 = vadd.f32 %v981, %v1069
    %v1071 = vpop.f32.mrf.mxu0
    %v1072 = vadd.f32 %v983, %v1071
    %1073 = vmatmul.bf16.gmra.mxu0 %v250
    %v1074 = vpop.f32.mrf.mxu0
    %v1075 = vadd.f32 %v986, %v1074
    %v1076 = vpop.f32.mrf.mxu0
    %v1077 = vadd.f32 %v988, %v1076
    %1078 = vmatmul.bf16.gmra.mxu0 %v257
    %v1079 = vpop.f32.mrf.mxu0
    %v1080 = vadd.f32 %v991, %v1079
    %v1081 = vpop.f32.mrf.mxu0
    %v1082 = vadd.f32 %v993, %v1081
    %1083 = vmatmul.bf16.gmra.mxu0 %v264
    %v1084 = vpop.f32.mrf.mxu0
    %v1085 = vadd.f32 %v996, %v1084
    %v1086 = vpop.f32.mrf.mxu0
    %v1087 = vadd.f32 %v998, %v1086
    %1088 = vmatmul.bf16.gmra.mxu0 %v271
    %v1089 = vpop.f32.mrf.mxu0
    %v1090 = vadd.f32 %v1001, %v1089
    %v1091 = vpop.f32.mrf.mxu0
    %v1092 = vadd.f32 %v1003, %v1091
    %1093 = vmatmul.bf16.gmra.mxu0 %v278
    %v1094 = vpop.f32.mrf.mxu0
    %v1095 = vadd.f32 %v1006, %v1094
    %v1096 = vpop.f32.mrf.mxu0
    %v1097 = vadd.f32 %v1008, %v1096
    %1098 = vmatmul.bf16.gmra.mxu0 %v285
    %v1099 = vpop.f32.mrf.mxu0
    %v1100 = vadd.f32 %v1011, %v1099
    %v1101 = vpop.f32.mrf.mxu0
    %v1102 = vadd.f32 %v1013, %v1101
    %1103 = vmatmul.bf16.gmra.mxu0 %v292
    %v1104 = vpop.f32.mrf.mxu0
    %v1105 = vadd.f32 %v1016, %v1104
    %v1106 = vpop.f32.mrf.mxu0
    %v1107 = vadd.f32 %v1018, %v1106
    %1108 = vmatmul.bf16.gmra.mxu0 %v299
    %v1109 = vpop.f32.mrf.mxu0
    %v1110 = vadd.f32 %v1021, %v1109
    %v1111 = vpop.f32.mrf.mxu0
    %v1112 = vadd.f32 %v1023, %v1111
    %1113 = vmatmul.bf16.gmra.mxu0 %v306
    %v1114 = vpop.f32.mrf.mxu0
    %v1115 = vadd.f32 %v1026, %v1114
    %v1116 = vpop.f32.mrf.mxu0
    %v1117 = vadd.f32 %v1028, %v1116
    %1118 = vmatmul.bf16.gmra.mxu0 %v313
    %v1119 = vpop.f32.mrf.mxu0
    %v1120 = vadd.f32 %v1031, %v1119
    %v1121 = vpop.f32.mrf.mxu0
    %v1122 = vadd.f32 %v1033, %v1121
    %1123 = vmatmul.bf16.gmra.mxu0 %v320
    %v1124 = vpop.f32.mrf.mxu0
    %v1125 = vadd.f32 %v1036, %v1124
    %v1126 = vpop.f32.mrf.mxu0
    %v1127 = vadd.f32 %v1038, %v1126
    %1128 = vmatmul.bf16.gmra.mxu0 %v327
    %v1129 = vpop.f32.mrf.mxu0
    %v1130 = vadd.f32 %v1041, %v1129
    %v1131 = vpop.f32.mrf.mxu0
    %v1132 = vadd.f32 %v1043, %v1131
    %1133 = vmatmul.bf16.gmra.mxu0 %v334
    %v1134 = vpop.f32.mrf.mxu0
    %v1135 = vadd.f32 %v1046, %v1134
    %v1136 = vpop.f32.mrf.mxu0
    %v1137 = vadd.f32 %v1048, %v1136
    %1138 = vmatmul.bf16.gmra.mxu0 %v341
    %v1139 = vpop.f32.mrf.mxu0
    %v1140 = vadd.f32 %v1051, %v1139
    %v1141 = vpop.f32.mrf.mxu0
    %v1142 = vadd.f32 %v1053, %v1141
    %1143 = vmatmul.bf16.gmra.mxu0 %v348
    %v1144 = vpop.f32.mrf.mxu0
    %v1145 = vadd.f32 %v1056, %v1144
    %v1146 = vpop.f32.mrf.mxu0
    %v1147 = vadd.f32 %v1058, %v1146
    %1148 = vdwg.mxu0
    %1149 = vmatpush.bf16.msra.mxu0 %v685
    %1150 = vmatpush.bf16.msra.mxu0 %v684
    %1151 = vmatpush.bf16.msra.mxu0 %v683
    %1152 = vmatpush.bf16.msra.mxu0 %v682
    %1153 = vmatpush.bf16.msra.mxu0 %v681
    %1154 = vmatpush.bf16.msra.mxu0 %v680
    %1155 = vmatpush.bf16.msra.mxu0 %v679
    %1156 = vmatpush.bf16.msra.mxu0 %v678
    %1157 = vmatmul.bf16.gmra.mxu0 %v244
    %v1158 = vpop.f32.mrf.mxu0
    %v1159 = vadd.f32 %v1070, %v1158
    %v1160 = vpop.f32.mrf.mxu0
    %v1161 = vadd.f32 %v1072, %v1160
    %1162 = vmatmul.bf16.gmra.mxu0 %v251
    %v1163 = vpop.f32.mrf.mxu0
    %v1164 = vadd.f32 %v1075, %v1163
    %v1165 = vpop.f32.mrf.mxu0
    %v1166 = vadd.f32 %v1077, %v1165
    %1167 = vmatmul.bf16.gmra.mxu0 %v258
    %v1168 = vpop.f32.mrf.mxu0
    %v1169 = vadd.f32 %v1080, %v1168
    %v1170 = vpop.f32.mrf.mxu0
    %v1171 = vadd.f32 %v1082, %v1170
    %1172 = vmatmul.bf16.gmra.mxu0 %v265
    %v1173 = vpop.f32.mrf.mxu0
    %v1174 = vadd.f32 %v1085, %v1173
    %v1175 = vpop.f32.mrf.mxu0
    %v1176 = vadd.f32 %v1087, %v1175
    %1177 = vmatmul.bf16.gmra.mxu0 %v272
    %v1178 = vpop.f32.mrf.mxu0
    %v1179 = vadd.f32 %v1090, %v1178
    %v1180 = vpop.f32.mrf.mxu0
    %v1181 = vadd.f32 %v1092, %v1180
    %1182 = vmatmul.bf16.gmra.mxu0 %v279
    %v1183 = vpop.f32.mrf.mxu0
    %v1184 = vadd.f32 %v1095, %v1183
    %v1185 = vpop.f32.mrf.mxu0
    %v1186 = vadd.f32 %v1097, %v1185
    %1187 = vmatmul.bf16.gmra.mxu0 %v286
    %v1188 = vpop.f32.mrf.mxu0
    %v1189 = vadd.f32 %v1100, %v1188
    %v1190 = vpop.f32.mrf.mxu0
    %v1191 = vadd.f32 %v1102, %v1190
    %1192 = vmatmul.bf16.gmra.mxu0 %v293
    %v1193 = vpop.f32.mrf.mxu0
    %v1194 = vadd.f32 %v1105, %v1193
    %v1195 = vpop.f32.mrf.mxu0
    %v1196 = vadd.f32 %v1107, %v1195
    %1197 = vmatmul.bf16.gmra.mxu0 %v300
    %v1198 = vpop.f32.mrf.mxu0
    %v1199 = vadd.f32 %v1110, %v1198
    %v1200 = vpop.f32.mrf.mxu0
    %v1201 = vadd.f32 %v1112, %v1200
    %1202 = vmatmul.bf16.gmra.mxu0 %v307
    %v1203 = vpop.f32.mrf.mxu0
    %v1204 = vadd.f32 %v1115, %v1203
    %v1205 = vpop.f32.mrf.mxu0
    %v1206 = vadd.f32 %v1117, %v1205
    %1207 = vmatmul.bf16.gmra.mxu0 %v314
    %v1208 = vpop.f32.mrf.mxu0
    %v1209 = vadd.f32 %v1120, %v1208
    %v1210 = vpop.f32.mrf.mxu0
    %v1211 = vadd.f32 %v1122, %v1210
    %1212 = vmatmul.bf16.gmra.mxu0 %v321
    %v1213 = vpop.f32.mrf.mxu0
    %v1214 = vadd.f32 %v1125, %v1213
    %v1215 = vpop.f32.mrf.mxu0
    %v1216 = vadd.f32 %v1127, %v1215
    %1217 = vmatmul.bf16.gmra.mxu0 %v328
    %v1218 = vpop.f32.mrf.mxu0
    %v1219 = vadd.f32 %v1130, %v1218
    %v1220 = vpop.f32.mrf.mxu0
    %v1221 = vadd.f32 %v1132, %v1220
    %1222 = vmatmul.bf16.gmra.mxu0 %v335
    %v1223 = vpop.f32.mrf.mxu0
    %v1224 = vadd.f32 %v1135, %v1223
    %v1225 = vpop.f32.mrf.mxu0
    %v1226 = vadd.f32 %v1137, %v1225
    %1227 = vmatmul.bf16.gmra.mxu0 %v342
    %v1228 = vpop.f32.mrf.mxu0
    %v1229 = vadd.f32 %v1140, %v1228
    %v1230 = vpop.f32.mrf.mxu0
    %v1231 = vadd.f32 %v1142, %v1230
    %1232 = vmatmul.bf16.gmra.mxu0 %v349
    %v1233 = vpop.f32.mrf.mxu0
    %v1234 = vadd.f32 %v1145, %v1233
    %v1235 = vpop.f32.mrf.mxu0
    %v1236 = vadd.f32 %v1147, %v1235
    %1237 = vdwg.mxu0
    %1238 = vmatpush.bf16.msra.mxu0 %v693
    %1239 = vmatpush.bf16.msra.mxu0 %v692
    %1240 = vmatpush.bf16.msra.mxu0 %v691
    %1241 = vmatpush.bf16.msra.mxu0 %v690
    %1242 = vmatpush.bf16.msra.mxu0 %v689
    %1243 = vmatpush.bf16.msra.mxu0 %v688
    %1244 = vmatpush.bf16.msra.mxu0 %v687
    %1245 = vmatpush.bf16.msra.mxu0 %v686
    %1246 = vmatmul.bf16.gmra.mxu0 %v245
    %v1247 = vpop.f32.mrf.mxu0
    %v1248 = vadd.f32 %v1159, %v1247
    %v1249 = vpop.f32.mrf.mxu0
    %v1250 = vadd.f32 %v1161, %v1249
    %1251 = vmatmul.bf16.gmra.mxu0 %v252
    %v1252 = vpop.f32.mrf.mxu0
    %v1253 = vadd.f32 %v1164, %v1252
    %v1254 = vpop.f32.mrf.mxu0
    %v1255 = vadd.f32 %v1166, %v1254
    %1256 = vmatmul.bf16.gmra.mxu0 %v259
    %v1257 = vpop.f32.mrf.mxu0
    %v1258 = vadd.f32 %v1169, %v1257
    %v1259 = vpop.f32.mrf.mxu0
    %v1260 = vadd.f32 %v1171, %v1259
    %1261 = vmatmul.bf16.gmra.mxu0 %v266
    %v1262 = vpop.f32.mrf.mxu0
    %v1263 = vadd.f32 %v1174, %v1262
    %v1264 = vpop.f32.mrf.mxu0
    %v1265 = vadd.f32 %v1176, %v1264
    %1266 = vmatmul.bf16.gmra.mxu0 %v273
    %v1267 = vpop.f32.mrf.mxu0
    %v1268 = vadd.f32 %v1179, %v1267
    %v1269 = vpop.f32.mrf.mxu0
    %v1270 = vadd.f32 %v1181, %v1269
    %1271 = vmatmul.bf16.gmra.mxu0 %v280
    %v1272 = vpop.f32.mrf.mxu0
    %v1273 = vadd.f32 %v1184, %v1272
    %v1274 = vpop.f32.mrf.mxu0
    %v1275 = vadd.f32 %v1186, %v1274
    %1276 = vmatmul.bf16.gmra.mxu0 %v287
    %v1277 = vpop.f32.mrf.mxu0
    %v1278 = vadd.f32 %v1189, %v1277
    %v1279 = vpop.f32.mrf.mxu0
    %v1280 = vadd.f32 %v1191, %v1279
    %1281 = vmatmul.bf16.gmra.mxu0 %v294
    %v1282 = vpop.f32.mrf.mxu0
    %v1283 = vadd.f32 %v1194, %v1282
    %v1284 = vpop.f32.mrf.mxu0
    %v1285 = vadd.f32 %v1196, %v1284
    %1286 = vmatmul.bf16.gmra.mxu0 %v301
    %v1287 = vpop.f32.mrf.mxu0
    %v1288 = vadd.f32 %v1199, %v1287
    %v1289 = vpop.f32.mrf.mxu0
    %v1290 = vadd.f32 %v1201, %v1289
    %1291 = vmatmul.bf16.gmra.mxu0 %v308
    %v1292 = vpop.f32.mrf.mxu0
    %v1293 = vadd.f32 %v1204, %v1292
    %v1294 = vpop.f32.mrf.mxu0
    %v1295 = vadd.f32 %v1206, %v1294
    %1296 = vmatmul.bf16.gmra.mxu0 %v315
    %v1297 = vpop.f32.mrf.mxu0
    %v1298 = vadd.f32 %v1209, %v1297
    %v1299 = vpop.f32.mrf.mxu0
    %v1300 = vadd.f32 %v1211, %v1299
    %1301 = vmatmul.bf16.gmra.mxu0 %v322
    %v1302 = vpop.f32.mrf.mxu0
    %v1303 = vadd.f32 %v1214, %v1302
    %v1304 = vpop.f32.mrf.mxu0
    %v1305 = vadd.f32 %v1216, %v1304
    %1306 = vmatmul.bf16.gmra.mxu0 %v329
    %v1307 = vpop.f32.mrf.mxu0
    %v1308 = vadd.f32 %v1219, %v1307
    %v1309 = vpop.f32.mrf.mxu0
    %v1310 = vadd.f32 %v1221, %v1309
    %1311 = vmatmul.bf16.gmra.mxu0 %v336
    %v1312 = vpop.f32.mrf.mxu0
    %v1313 = vadd.f32 %v1224, %v1312
    %v1314 = vpop.f32.mrf.mxu0
    %v1315 = vadd.f32 %v1226, %v1314
    %1316 = vmatmul.bf16.gmra.mxu0 %v343
    %v1317 = vpop.f32.mrf.mxu0
    %v1318 = vadd.f32 %v1229, %v1317
    %v1319 = vpop.f32.mrf.mxu0
    %v1320 = vadd.f32 %v1231, %v1319
    %1321 = vmatmul.bf16.gmra.mxu0 %v350
    %v1322 = vpop.f32.mrf.mxu0
    %v1323 = vadd.f32 %v1234, %v1322
    %v1324 = vpop.f32.mrf.mxu0
    %v1325 = vadd.f32 %v1236, %v1324
    %1326 = vdwg.mxu0
    %1327 = vmatpush.bf16.msra.mxu0 0
    %1328 = vmatpush.bf16.msra.mxu0 0
    %1329 = vmatpush.bf16.msra.mxu0 0
    %1330 = vmatpush.bf16.msra.mxu0 0
    %1331 = vmatpush.bf16.msra.mxu0 0
    %1332 = vmatpush.bf16.msra.mxu0 0
    %1333 = vmatpush.bf16.msra.mxu0 0
    %1334 = vmatpush.bf16.msra.mxu0 %v694
    %1335 = vmatmul.bf16.gmra.mxu0 %v746
    %v1336 = vpop.f32.mrf.mxu0
    %v1337 = vadd.f32 %v1248, %v1336
    %v1338 = vpop.f32.mrf.mxu0
    %v1339 = vadd.f32 %v1250, %v1338
    %1340 = vmatmul.bf16.gmra.mxu0 %v749
    %v1341 = vpop.f32.mrf.mxu0
    %v1342 = vadd.f32 %v1253, %v1341
    %v1343 = vpop.f32.mrf.mxu0
    %v1344 = vadd.f32 %v1255, %v1343
    %1345 = vmatmul.bf16.gmra.mxu0 %v752
    %v1346 = vpop.f32.mrf.mxu0
    %v1347 = vadd.f32 %v1258, %v1346
    %v1348 = vpop.f32.mrf.mxu0
    %v1349 = vadd.f32 %v1260, %v1348
    %1350 = vmatmul.bf16.gmra.mxu0 %v755
    %v1351 = vpop.f32.mrf.mxu0
    %v1352 = vadd.f32 %v1263, %v1351
    %v1353 = vpop.f32.mrf.mxu0
    %v1354 = vadd.f32 %v1265, %v1353
    %1355 = vmatmul.bf16.gmra.mxu0 %v758
    %v1356 = vpop.f32.mrf.mxu0
    %v1357 = vadd.f32 %v1268, %v1356
    %v1358 = vpop.f32.mrf.mxu0
    %v1359 = vadd.f32 %v1270, %v1358
    %1360 = vmatmul.bf16.gmra.mxu0 %v761
    %v1361 = vpop.f32.mrf.mxu0
    %v1362 = vadd.f32 %v1273, %v1361
    %v1363 = vpop.f32.mrf.mxu0
    %v1364 = vadd.f32 %v1275, %v1363
    %1365 = vmatmul.bf16.gmra.mxu0 %v764
    %v1366 = vpop.f32.mrf.mxu0
    %v1367 = vadd.f32 %v1278, %v1366
    %v1368 = vpop.f32.mrf.mxu0
    %v1369 = vadd.f32 %v1280, %v1368
    %1370 = vmatmul.bf16.gmra.mxu0 %v767
    %v1371 = vpop.f32.mrf.mxu0
    %v1372 = vadd.f32 %v1283, %v1371
    %v1373 = vpop.f32.mrf.mxu0
    %v1374 = vadd.f32 %v1285, %v1373
    %1375 = vmatmul.bf16.gmra.mxu0 %v770
    %v1376 = vpop.f32.mrf.mxu0
    %v1377 = vadd.f32 %v1288, %v1376
    %v1378 = vpop.f32.mrf.mxu0
    %v1379 = vadd.f32 %v1290, %v1378
    %1380 = vmatmul.bf16.gmra.mxu0 %v773
    %v1381 = vpop.f32.mrf.mxu0
    %v1382 = vadd.f32 %v1293, %v1381
    %v1383 = vpop.f32.mrf.mxu0
    %v1384 = vadd.f32 %v1295, %v1383
    %1385 = vmatmul.bf16.gmra.mxu0 %v776
    %v1386 = vpop.f32.mrf.mxu0
    %v1387 = vadd.f32 %v1298, %v1386
    %v1388 = vpop.f32.mrf.mxu0
    %v1389 = vadd.f32 %v1300, %v1388
    %1390 = vmatmul.bf16.gmra.mxu0 %v779
    %v1391 = vpop.f32.mrf.mxu0
    %v1392 = vadd.f32 %v1303, %v1391
    %v1393 = vpop.f32.mrf.mxu0
    %v1394 = vadd.f32 %v1305, %v1393
    %1395 = vmatmul.bf16.gmra.mxu0 %v782
    %v1396 = vpop.f32.mrf.mxu0
    %v1397 = vadd.f32 %v1308, %v1396
    %v1398 = vpop.f32.mrf.mxu0
    %v1399 = vadd.f32 %v1310, %v1398
    %1400 = vmatmul.bf16.gmra.mxu0 %v785
    %v1401 = vpop.f32.mrf.mxu0
    %v1402 = vadd.f32 %v1313, %v1401
    %v1403 = vpop.f32.mrf.mxu0
    %v1404 = vadd.f32 %v1315, %v1403
    %1405 = vmatmul.bf16.gmra.mxu0 %v788
    %v1406 = vpop.f32.mrf.mxu0
    %v1407 = vadd.f32 %v1318, %v1406
    %v1408 = vpop.f32.mrf.mxu0
    %v1409 = vadd.f32 %v1320, %v1408
    %1410 = vmatmul.bf16.gmra.mxu0 %v791
    %v1411 = vpop.f32.mrf.mxu0
    %v1412 = vadd.f32 %v1323, %v1411
    %v1413 = vpop.f32.mrf.mxu0
    %v1414 = vadd.f32 %v1325, %v1413
    %1415 = vdwg.mxu0
    %v1416 = vmax.f32 %v1337, 0.0
    %v1417 = vmax.f32 %v1339, 0.0
    %v1418 = vmax.f32 %v1342, 0.0
    %v1419 = vmax.f32 %v1344, 0.0
    %v1420 = vmax.f32 %v1347, 0.0
    %v1421 = vmax.f32 %v1349, 0.0
    %v1422 = vmax.f32 %v1352, 0.0
    %v1423 = vmax.f32 %v1354, 0.0
    %v1424 = vmax.f32 %v1357, 0.0
    %v1425 = vmax.f32 %v1359, 0.0
    %v1426 = vmax.f32 %v1362, 0.0
    %v1427 = vmax.f32 %v1364, 0.0
    %v1428 = vmax.f32 %v1367, 0.0
    %v1429 = vmax.f32 %v1369, 0.0
    %v1430 = vmax.f32 %v1372, 0.0
    %v1431 = vmax.f32 %v1374, 0.0
    %v1432 = vmax.f32 %v1377, 0.0
    %v1433 = vmax.f32 %v1379, 0.0
    %v1434 = vmax.f32 %v1382, 0.0
    %v1435 = vmax.f32 %v1384, 0.0
    %v1436 = vmax.f32 %v1387, 0.0
    %v1437 = vmax.f32 %v1389, 0.0
    %v1438 = vmax.f32 %v1392, 0.0
    %v1439 = vmax.f32 %v1394, 0.0
    %v1440 = vmax.f32 %v1397, 0.0
    %v1441 = vmax.f32 %v1399, 0.0
    %v1442 = vmax.f32 %v1402, 0.0
    %v1443 = vmax.f32 %v1404, 0.0
    %v1444 = vmax.f32 %v1407, 0.0
    %v1445 = vmax.f32 %v1409, 0.0
    %v1446 = vmax.f32 %v1412, 0.0
    %v1447 = vmax.f32 %v1414, 0.0
    %v1448 = vpack.c.bf16 %v1417, %v1416
    %v1449 = vpack.c.bf16 %v1419, %v1418
    %v1450 = vpack.c.bf16 %v1421, %v1420
    %v1451 = vpack.c.bf16 %v1423, %v1422
    %v1452 = vpack.c.bf16 %v1425, %v1424
    %v1453 = vpack.c.bf16 %v1427, %v1426
    %v1454 = vpack.c.bf16 %v1429, %v1428
    %v1455 = vpack.c.bf16 %v1431, %v1430
    %v1456 = vpack.c.bf16 %v1433, %v1432
    %v1457 = vpack.c.bf16 %v1435, %v1434
    %v1458 = vpack.c.bf16 %v1437, %v1436
    %v1459 = vpack.c.bf16 %v1439, %v1438
    %v1460 = vpack.c.bf16 %v1441, %v1440
    %v1461 = vpack.c.bf16 %v1443, %v1442
    %v1462 = vpack.c.bf16 %v1445, %v1444
    %v1463 = vpack.c.bf16 %v1447, %v1446
    %v1464 = vld [vmem:[%s2] sm:$0xf]
    %v1465 = vld [vmem:[%s2 + $0x4] sm:$0xf]
    %v1466 = vld [vmem:[%s2 + $0x8] sm:$0xf]
    %v1467 = vld [vmem:[%s2 + $0xc] sm:$0xf]
    %v1468 = vld [vmem:[%s2 + $0x10] sm:$0xf]
    %v1469 = vld [vmem:[%s2 + $0x14] sm:$0xf]
    %v1470 = vld [vmem:[%s2 + $0x18] sm:$0xf]
    %v1471 = vld [vmem:[%s2 + $0x1c] sm:$0xf]
    %v1472 = vld [vmem:[%s2 + $0x20] sm:$0xf]
    %v1473 = vld [vmem:[%s2 + $0x24] sm:$0xf]
    %v1474 = vld [vmem:[%s2 + $0x28] sm:$0xf]
    %v1475 = vld [vmem:[%s2 + $0x2c] sm:$0xf]
    %v1476 = vld [vmem:[%s2 + $0x30] sm:$0xf]
    %v1477 = vld [vmem:[%s2 + $0x34] sm:$0xf]
    %v1478 = vld [vmem:[%s2 + $0x38] sm:$0xf]
    %v1479 = vld [vmem:[%s2 + $0x3c] sm:$0xf]
    %v1496 = vunpack.c.l.b16 %v1464
    %v1497 = vunpack.c.l.b16 %v1465
    %v1498 = vunpack.c.l.b16 %v1466
    %v1499 = vunpack.c.l.b16 %v1467
    %v1500 = vunpack.c.l.b16 %v1468
    %v1501 = vunpack.c.l.b16 %v1469
    %v1502 = vunpack.c.l.b16 %v1470
    %v1503 = vunpack.c.l.b16 %v1471
    %v1504 = vunpack.c.l.b16 %v1472
    %v1505 = vunpack.c.l.b16 %v1473
    %v1506 = vunpack.c.l.b16 %v1474
    %v1507 = vunpack.c.l.b16 %v1475
    %v1508 = vunpack.c.l.b16 %v1476
    %v1509 = vunpack.c.l.b16 %v1477
    %v1510 = vunpack.c.l.b16 %v1478
    %v1511 = vunpack.c.l.b16 %v1479
    %v1512 = vpack.c.b16 %v1497, %v1496
    %v1513 = vpack.c.b16 %v1499, %v1498
    %v1514 = vpack.c.b16 %v1501, %v1500
    %v1515 = vpack.c.b16 %v1503, %v1502
    %v1516 = vpack.c.b16 %v1505, %v1504
    %v1517 = vpack.c.b16 %v1507, %v1506
    %v1518 = vpack.c.b16 %v1509, %v1508
    %v1519 = vpack.c.b16 %v1511, %v1510
    %1528 = vmatpush.bf16.msra.mxu0 %v1519
    %1529 = vmatpush.bf16.msra.mxu0 %v1518
    %1530 = vmatpush.bf16.msra.mxu0 %v1517
    %1531 = vmatpush.bf16.msra.mxu0 %v1516
    %1532 = vmatpush.bf16.msra.mxu0 %v1515
    %1533 = vmatpush.bf16.msra.mxu0 %v1514
    %1534 = vmatpush.bf16.msra.mxu0 %v1513
    %1535 = vmatpush.bf16.msra.mxu0 %v1512
    %1536 = vmatmul.bf16.gmra.mxu0 %v1448
    %v1537 = vpop.f32.mrf.mxu0
    %v1538 = vadd.f32 0.0, %v1537
    %v1539 = vpop.f32.mrf.mxu0
    %v1540 = vadd.f32 0.0, %v1539
    %1541 = vmatmul.bf16.gmra.mxu0 %v1449
    %v1542 = vpop.f32.mrf.mxu0
    %v1543 = vadd.f32 0.0, %v1542
    %v1544 = vpop.f32.mrf.mxu0
    %v1545 = vadd.f32 0.0, %v1544
    %1546 = vmatmul.bf16.gmra.mxu0 %v1450
    %v1547 = vpop.f32.mrf.mxu0
    %v1548 = vadd.f32 0.0, %v1547
    %v1549 = vpop.f32.mrf.mxu0
    %v1550 = vadd.f32 0.0, %v1549
    %1551 = vmatmul.bf16.gmra.mxu0 %v1451
    %v1552 = vpop.f32.mrf.mxu0
    %v1553 = vadd.f32 0.0, %v1552
    %v1554 = vpop.f32.mrf.mxu0
    %v1555 = vadd.f32 0.0, %v1554
    %1556 = vmatmul.bf16.gmra.mxu0 %v1452
    %v1557 = vpop.f32.mrf.mxu0
    %v1558 = vadd.f32 0.0, %v1557
    %v1559 = vpop.f32.mrf.mxu0
    %v1560 = vadd.f32 0.0, %v1559
    %1561 = vmatmul.bf16.gmra.mxu0 %v1453
    %v1562 = vpop.f32.mrf.mxu0
    %v1563 = vadd.f32 0.0, %v1562
    %v1564 = vpop.f32.mrf.mxu0
    %v1565 = vadd.f32 0.0, %v1564
    %1566 = vmatmul.bf16.gmra.mxu0 %v1454
    %v1567 = vpop.f32.mrf.mxu0
    %v1568 = vadd.f32 0.0, %v1567
    %v1569 = vpop.f32.mrf.mxu0
    %v1570 = vadd.f32 0.0, %v1569
    %1571 = vmatmul.bf16.gmra.mxu0 %v1455
    %v1572 = vpop.f32.mrf.mxu0
    %v1573 = vadd.f32 0.0, %v1572
    %v1574 = vpop.f32.mrf.mxu0
    %v1575 = vadd.f32 0.0, %v1574
    %1576 = vmatmul.bf16.gmra.mxu0 %v1456
    %v1577 = vpop.f32.mrf.mxu0
    %v1578 = vadd.f32 0.0, %v1577
    %v1579 = vpop.f32.mrf.mxu0
    %v1580 = vadd.f32 0.0, %v1579
    %1581 = vmatmul.bf16.gmra.mxu0 %v1457
    %v1582 = vpop.f32.mrf.mxu0
    %v1583 = vadd.f32 0.0, %v1582
    %v1584 = vpop.f32.mrf.mxu0
    %v1585 = vadd.f32 0.0, %v1584
    %1586 = vmatmul.bf16.gmra.mxu0 %v1458
    %v1587 = vpop.f32.mrf.mxu0
    %v1588 = vadd.f32 0.0, %v1587
    %v1589 = vpop.f32.mrf.mxu0
    %v1590 = vadd.f32 0.0, %v1589
    %1591 = vmatmul.bf16.gmra.mxu0 %v1459
    %v1592 = vpop.f32.mrf.mxu0
    %v1593 = vadd.f32 0.0, %v1592
    %v1594 = vpop.f32.mrf.mxu0
    %v1595 = vadd.f32 0.0, %v1594
    %1596 = vmatmul.bf16.gmra.mxu0 %v1460
    %v1597 = vpop.f32.mrf.mxu0
    %v1598 = vadd.f32 0.0, %v1597
    %v1599 = vpop.f32.mrf.mxu0
    %v1600 = vadd.f32 0.0, %v1599
    %1601 = vmatmul.bf16.gmra.mxu0 %v1461
    %v1602 = vpop.f32.mrf.mxu0
    %v1603 = vadd.f32 0.0, %v1602
    %v1604 = vpop.f32.mrf.mxu0
    %v1605 = vadd.f32 0.0, %v1604
    %1606 = vmatmul.bf16.gmra.mxu0 %v1462
    %v1607 = vpop.f32.mrf.mxu0
    %v1608 = vadd.f32 0.0, %v1607
    %v1609 = vpop.f32.mrf.mxu0
    %v1610 = vadd.f32 0.0, %v1609
    %1611 = vmatmul.bf16.gmra.mxu0 %v1463
    %v1612 = vpop.f32.mrf.mxu0
    %v1613 = vadd.f32 0.0, %v1612
    %v1614 = vpop.f32.mrf.mxu0
    %v1615 = vadd.f32 0.0, %v1614
    %1616 = vdwg.mxu0
    %v1617 = vmax.f32 %v1538, 0.0
    %v1618 = vmax.f32 %v1540, 0.0
    %v1619 = vmax.f32 %v1543, 0.0
    %v1620 = vmax.f32 %v1545, 0.0
    %v1621 = vmax.f32 %v1548, 0.0
    %v1622 = vmax.f32 %v1550, 0.0
    %v1623 = vmax.f32 %v1553, 0.0
    %v1624 = vmax.f32 %v1555, 0.0
    %v1625 = vmax.f32 %v1558, 0.0
    %v1626 = vmax.f32 %v1560, 0.0
    %v1627 = vmax.f32 %v1563, 0.0
    %v1628 = vmax.f32 %v1565, 0.0
    %v1629 = vmax.f32 %v1568, 0.0
    %v1630 = vmax.f32 %v1570, 0.0
    %v1631 = vmax.f32 %v1573, 0.0
    %v1632 = vmax.f32 %v1575, 0.0
    %v1633 = vmax.f32 %v1578, 0.0
    %v1634 = vmax.f32 %v1580, 0.0
    %v1635 = vmax.f32 %v1583, 0.0
    %v1636 = vmax.f32 %v1585, 0.0
    %v1637 = vmax.f32 %v1588, 0.0
    %v1638 = vmax.f32 %v1590, 0.0
    %v1639 = vmax.f32 %v1593, 0.0
    %v1640 = vmax.f32 %v1595, 0.0
    %v1641 = vmax.f32 %v1598, 0.0
    %v1642 = vmax.f32 %v1600, 0.0
    %v1643 = vmax.f32 %v1603, 0.0
    %v1644 = vmax.f32 %v1605, 0.0
    %v1645 = vmax.f32 %v1608, 0.0
    %v1646 = vmax.f32 %v1610, 0.0
    %v1647 = vmax.f32 %v1613, 0.0
    %v1648 = vmax.f32 %v1615, 0.0
    %v1649 = vpack.c.bf16 %v1618, %v1617
    %v1650 = vpack.c.bf16 %v1620, %v1619
    %v1651 = vpack.c.bf16 %v1622, %v1621
    %v1652 = vpack.c.bf16 %v1624, %v1623
    %v1653 = vpack.c.bf16 %v1626, %v1625
    %v1654 = vpack.c.bf16 %v1628, %v1627
    %v1655 = vpack.c.bf16 %v1630, %v1629
    %v1656 = vpack.c.bf16 %v1632, %v1631
    %v1657 = vpack.c.bf16 %v1634, %v1633
    %v1658 = vpack.c.bf16 %v1636, %v1635
    %v1659 = vpack.c.bf16 %v1638, %v1637
    %v1660 = vpack.c.bf16 %v1640, %v1639
    %v1661 = vpack.c.bf16 %v1642, %v1641
    %v1662 = vpack.c.bf16 %v1644, %v1643
    %v1663 = vpack.c.bf16 %v1646, %v1645
    %v1664 = vpack.c.bf16 %v1648, %v1647
    %s1665 = scalar_lea.vmem %s2, 64
    %v1666 = vld [vmem:[%s1665] sm:$0xf]
    %v1667 = vld [vmem:[%s1665 + $0x4] sm:$0xf]
    %v1668 = vld [vmem:[%s1665 + $0x8] sm:$0xf]
    %v1669 = vld [vmem:[%s1665 + $0xc] sm:$0xf]
    %v1670 = vld [vmem:[%s1665 + $0x10] sm:$0xf]
    %v1671 = vld [vmem:[%s1665 + $0x14] sm:$0xf]
    %v1672 = vld [vmem:[%s1665 + $0x18] sm:$0xf]
    %v1673 = vld [vmem:[%s1665 + $0x1c] sm:$0xf]
    %v1674 = vld [vmem:[%s1665 + $0x20] sm:$0xf]
    %v1675 = vld [vmem:[%s1665 + $0x24] sm:$0xf]
    %v1676 = vld [vmem:[%s1665 + $0x28] sm:$0xf]
    %v1677 = vld [vmem:[%s1665 + $0x2c] sm:$0xf]
    %v1678 = vld [vmem:[%s1665 + $0x30] sm:$0xf]
    %v1679 = vld [vmem:[%s1665 + $0x34] sm:$0xf]
    %v1680 = vld [vmem:[%s1665 + $0x38] sm:$0xf]
    %v1681 = vld [vmem:[%s1665 + $0x3c] sm:$0xf]
    %v1698 = vunpack.c.l.b16 %v1666
    %v1699 = vunpack.c.l.b16 %v1667
    %v1700 = vunpack.c.l.b16 %v1668
    %v1701 = vunpack.c.l.b16 %v1669
    %v1702 = vunpack.c.l.b16 %v1670
    %v1703 = vunpack.c.l.b16 %v1671
    %v1704 = vunpack.c.l.b16 %v1672
    %v1705 = vunpack.c.l.b16 %v1673
    %v1706 = vunpack.c.l.b16 %v1674
    %v1707 = vunpack.c.l.b16 %v1675
    %v1708 = vunpack.c.l.b16 %v1676
    %v1709 = vunpack.c.l.b16 %v1677
    %v1710 = vunpack.c.l.b16 %v1678
    %v1711 = vunpack.c.l.b16 %v1679
    %v1712 = vunpack.c.l.b16 %v1680
    %v1713 = vunpack.c.l.b16 %v1681
    %v1714 = vpack.c.b16 %v1699, %v1698
    %v1715 = vpack.c.b16 %v1701, %v1700
    %v1716 = vpack.c.b16 %v1703, %v1702
    %v1717 = vpack.c.b16 %v1705, %v1704
    %v1718 = vpack.c.b16 %v1707, %v1706
    %v1719 = vpack.c.b16 %v1709, %v1708
    %v1720 = vpack.c.b16 %v1711, %v1710
    %v1721 = vpack.c.b16 %v1713, %v1712
    %1730 = vmatpush.bf16.msra.mxu0 %v1721
    %1731 = vmatpush.bf16.msra.mxu0 %v1720
    %1732 = vmatpush.bf16.msra.mxu0 %v1719
    %1733 = vmatpush.bf16.msra.mxu0 %v1718
    %1734 = vmatpush.bf16.msra.mxu0 %v1717
    %1735 = vmatpush.bf16.msra.mxu0 %v1716
    %1736 = vmatpush.bf16.msra.mxu0 %v1715
    %1737 = vmatpush.bf16.msra.mxu0 %v1714
    %1738 = vmatmul.bf16.gmra.mxu0 %v1649
    %v1739 = vpop.f32.mrf.mxu0
    %v1740 = vadd.f32 0.0, %v1739
    %v1741 = vpop.f32.mrf.mxu0
    %v1742 = vadd.f32 0.0, %v1741
    %1743 = vmatmul.bf16.gmra.mxu0 %v1650
    %v1744 = vpop.f32.mrf.mxu0
    %v1745 = vadd.f32 0.0, %v1744
    %v1746 = vpop.f32.mrf.mxu0
    %v1747 = vadd.f32 0.0, %v1746
    %1748 = vmatmul.bf16.gmra.mxu0 %v1651
    %v1749 = vpop.f32.mrf.mxu0
    %v1750 = vadd.f32 0.0, %v1749
    %v1751 = vpop.f32.mrf.mxu0
    %v1752 = vadd.f32 0.0, %v1751
    %1753 = vmatmul.bf16.gmra.mxu0 %v1652
    %v1754 = vpop.f32.mrf.mxu0
    %v1755 = vadd.f32 0.0, %v1754
    %v1756 = vpop.f32.mrf.mxu0
    %v1757 = vadd.f32 0.0, %v1756
    %1758 = vmatmul.bf16.gmra.mxu0 %v1653
    %v1759 = vpop.f32.mrf.mxu0
    %v1760 = vadd.f32 0.0, %v1759
    %v1761 = vpop.f32.mrf.mxu0
    %v1762 = vadd.f32 0.0, %v1761
    %1763 = vmatmul.bf16.gmra.mxu0 %v1654
    %v1764 = vpop.f32.mrf.mxu0
    %v1765 = vadd.f32 0.0, %v1764
    %v1766 = vpop.f32.mrf.mxu0
    %v1767 = vadd.f32 0.0, %v1766
    %1768 = vmatmul.bf16.gmra.mxu0 %v1655
    %v1769 = vpop.f32.mrf.mxu0
    %v1770 = vadd.f32 0.0, %v1769
    %v1771 = vpop.f32.mrf.mxu0
    %v1772 = vadd.f32 0.0, %v1771
    %1773 = vmatmul.bf16.gmra.mxu0 %v1656
    %v1774 = vpop.f32.mrf.mxu0
    %v1775 = vadd.f32 0.0, %v1774
    %v1776 = vpop.f32.mrf.mxu0
    %v1777 = vadd.f32 0.0, %v1776
    %1778 = vmatmul.bf16.gmra.mxu0 %v1657
    %v1779 = vpop.f32.mrf.mxu0
    %v1780 = vadd.f32 0.0, %v1779
    %v1781 = vpop.f32.mrf.mxu0
    %v1782 = vadd.f32 0.0, %v1781
    %1783 = vmatmul.bf16.gmra.mxu0 %v1658
    %v1784 = vpop.f32.mrf.mxu0
    %v1785 = vadd.f32 0.0, %v1784
    %v1786 = vpop.f32.mrf.mxu0
    %v1787 = vadd.f32 0.0, %v1786
    %1788 = vmatmul.bf16.gmra.mxu0 %v1659
    %v1789 = vpop.f32.mrf.mxu0
    %v1790 = vadd.f32 0.0, %v1789
    %v1791 = vpop.f32.mrf.mxu0
    %v1792 = vadd.f32 0.0, %v1791
    %1793 = vmatmul.bf16.gmra.mxu0 %v1660
    %v1794 = vpop.f32.mrf.mxu0
    %v1795 = vadd.f32 0.0, %v1794
    %v1796 = vpop.f32.mrf.mxu0
    %v1797 = vadd.f32 0.0, %v1796
    %1798 = vmatmul.bf16.gmra.mxu0 %v1661
    %v1799 = vpop.f32.mrf.mxu0
    %v1800 = vadd.f32 0.0, %v1799
    %v1801 = vpop.f32.mrf.mxu0
    %v1802 = vadd.f32 0.0, %v1801
    %1803 = vmatmul.bf16.gmra.mxu0 %v1662
    %v1804 = vpop.f32.mrf.mxu0
    %v1805 = vadd.f32 0.0, %v1804
    %v1806 = vpop.f32.mrf.mxu0
    %v1807 = vadd.f32 0.0, %v1806
    %1808 = vmatmul.bf16.gmra.mxu0 %v1663
    %v1809 = vpop.f32.mrf.mxu0
    %v1810 = vadd.f32 0.0, %v1809
    %v1811 = vpop.f32.mrf.mxu0
    %v1812 = vadd.f32 0.0, %v1811
    %1813 = vmatmul.bf16.gmra.mxu0 %v1664
    %v1814 = vpop.f32.mrf.mxu0
    %v1815 = vadd.f32 0.0, %v1814
    %v1816 = vpop.f32.mrf.mxu0
    %v1817 = vadd.f32 0.0, %v1816
    %1818 = vdwg.mxu0
    %v1819 = vmax.f32 %v1740, 0.0
    %v1820 = vmax.f32 %v1742, 0.0
    %v1821 = vmax.f32 %v1745, 0.0
    %v1822 = vmax.f32 %v1747, 0.0
    %v1823 = vmax.f32 %v1750, 0.0
    %v1824 = vmax.f32 %v1752, 0.0
    %v1825 = vmax.f32 %v1755, 0.0
    %v1826 = vmax.f32 %v1757, 0.0
    %v1827 = vmax.f32 %v1760, 0.0
    %v1828 = vmax.f32 %v1762, 0.0
    %v1829 = vmax.f32 %v1765, 0.0
    %v1830 = vmax.f32 %v1767, 0.0
    %v1831 = vmax.f32 %v1770, 0.0
    %v1832 = vmax.f32 %v1772, 0.0
    %v1833 = vmax.f32 %v1775, 0.0
    %v1834 = vmax.f32 %v1777, 0.0
    %v1835 = vmax.f32 %v1780, 0.0
    %v1836 = vmax.f32 %v1782, 0.0
    %v1837 = vmax.f32 %v1785, 0.0
    %v1838 = vmax.f32 %v1787, 0.0
    %v1839 = vmax.f32 %v1790, 0.0
    %v1840 = vmax.f32 %v1792, 0.0
    %v1841 = vmax.f32 %v1795, 0.0
    %v1842 = vmax.f32 %v1797, 0.0
    %v1843 = vmax.f32 %v1800, 0.0
    %v1844 = vmax.f32 %v1802, 0.0
    %v1845 = vmax.f32 %v1805, 0.0
    %v1846 = vmax.f32 %v1807, 0.0
    %v1847 = vmax.f32 %v1810, 0.0
    %v1848 = vmax.f32 %v1812, 0.0
    %v1849 = vmax.f32 %v1815, 0.0
    %v1850 = vmax.f32 %v1817, 0.0
    %1851 = vst [vmem:[#allocation2] sm:$0xff] %v1819
    %1852 = vst [vmem:[#allocation2 + $0x8] sm:$0xff] %v1820
    %1853 = vst [vmem:[#allocation2 + $0x10] sm:$0xff] %v1821
    %1854 = vst [vmem:[#allocation2 + $0x18] sm:$0xff] %v1822
    %1855 = vst [vmem:[#allocation2 + $0x20] sm:$0xff] %v1823
    %1856 = vst [vmem:[#allocation2 + $0x28] sm:$0xff] %v1824
    %1857 = vst [vmem:[#allocation2 + $0x30] sm:$0xff] %v1825
    %1858 = vst [vmem:[#allocation2 + $0x38] sm:$0xff] %v1826
    %1859 = vst [vmem:[#allocation2 + $0x40] sm:$0xff] %v1827
    %1860 = vst [vmem:[#allocation2 + $0x48] sm:$0xff] %v1828
    %1861 = vst [vmem:[#allocation2 + $0x50] sm:$0xff] %v1829
    %1862 = vst [vmem:[#allocation2 + $0x58] sm:$0xff] %v1830
    %1863 = vst [vmem:[#allocation2 + $0x60] sm:$0xff] %v1831
    %1864 = vst [vmem:[#allocation2 + $0x68] sm:$0xff] %v1832
    %1865 = vst [vmem:[#allocation2 + $0x70] sm:$0xff] %v1833
    %1866 = vst [vmem:[#allocation2 + $0x78] sm:$0xff] %v1834
    %1867 = vst [vmem:[#allocation2 + $0x80] sm:$0xff] %v1835
    %1868 = vst [vmem:[#allocation2 + $0x88] sm:$0xff] %v1836
    %1869 = vst [vmem:[#allocation2 + $0x90] sm:$0xff] %v1837
    %1870 = vst [vmem:[#allocation2 + $0x98] sm:$0xff] %v1838
    %1871 = vst [vmem:[#allocation2 + $0xa0] sm:$0xff] %v1839
    %1872 = vst [vmem:[#allocation2 + $0xa8] sm:$0xff] %v1840
    %1873 = vst [vmem:[#allocation2 + $0xb0] sm:$0xff] %v1841
    %1874 = vst [vmem:[#allocation2 + $0xb8] sm:$0xff] %v1842
    %1875 = vst [vmem:[#allocation2 + $0xc0] sm:$0xff] %v1843
    %1876 = vst [vmem:[#allocation2 + $0xc8] sm:$0xff] %v1844
    %1877 = vst [vmem:[#allocation2 + $0xd0] sm:$0xff] %v1845
    %1878 = vst [vmem:[#allocation2 + $0xd8] sm:$0xff] %v1846
    %1879 = vst [vmem:[#allocation2 + $0xe0] sm:$0xff] %v1847
    %1880 = vst [vmem:[#allocation2 + $0xe8] sm:$0xff] %v1848
    %1881 = vst [vmem:[#allocation2 + $0xf0] sm:$0xff] %v1849
    %1882 = vst [vmem:[#allocation2 + $0xf8] sm:$0xff] %v1850
    // Predicated region
    $region14: #{tpu_custom_call.1} parent=1 // pred_check
      _
    $region15: #{tpu_custom_call.1} parent=1 // pred_check_branch
      %1884 = sbr.rel (0) target = $region17
    $region16: #{tpu_custom_call.1} parent=1 // pred_region
      %1886 = vsyncadd [#allocation3], 0
      %s1887 = sshll.u32 [#allocation2], 4
      %s1888 = int_to_ptr.vmem [resolvable:$true] %s1887
      %s1889 = sshll.u32 %s3, 4
      %s1890 = int_to_ptr.hbm [resolvable:$true] %s1889
      %1895 = dma.vmem_to_hbm [thread:$0]  %s1888, 4096, %s1890, [#allocation3], 128, 128, 8
    $region17: #{tpu_custom_call.1} parent=1 // pred_fallthru
      _
    // Predicated region
    $region18: #{tpu_custom_call.1} parent=1 // pred_check
      _
    $region19: #{tpu_custom_call.1} parent=1 // pred_check_branch
      %1897 = sbr.rel (0) target = $region21
    $region20: #{tpu_custom_call.1} parent=1 // pred_region
      %1899 = dma.done [#allocation3], 4096
    $region21: #{tpu_custom_call.1} parent=1 // pred_fallthru
      _
    %1900 = vsyncpa [#allocation3], 1

</llo_original>
